<compile_context>
chip_gen: v7x
topology: tpu7x:2x2x1
jax: 0.10.0
libtpu: 0.0.40
codegen_flags: <defaults>
</compile_context>

<pallas_src>
import functools

import jax
import jax.numpy as jnp
from jax.experimental import pallas as pl
from jax.experimental.pallas import tpu as pltpu


# ----------------------------------------------------------------------------
# Tile / VMEM sizing helpers (trace-time, pure Python ints).
# ----------------------------------------------------------------------------
def _vmem_capacity_bytes():
    try:
        return int(pltpu.get_tpu_info().vmem_capacity_bytes)
    except Exception:
        return 64 * 1024 * 1024  # conservative (v7x per-TC) fallback


def _pick_tile_hw(hw, b, c, cm, cn, vmem_capacity, max_tile_hw=None):
    """Largest HW tile (multiple of 128, dividing hw) that fits the VMEM budget."""
    budget = vmem_capacity // 4                       # headroom: dbl buffers, spills
    per_col = 4 * b * (4 * c + 8 * max(cm, cn, 1))    # rough live f32 bytes / column
    cap = max(128, (budget // max(per_col, 1)) // 128 * 128)
    if max_tile_hw is not None:
        cap = min(cap, max_tile_hw)
    if hw <= cap:
        return hw                                     # whole spatial extent fits
    t = min(cap, hw) // 128 * 128
    while t >= 128:
        if hw % t == 0:
            return t
        t -= 128
    # TODO(synk): pad HW to a multiple of 128 (with masking) instead of falling
    # back to a full-extent block for awkward spatial sizes.
    return hw


def _vmem_limit_bytes(b, c, cm, cn, tile_hw, vmem_capacity):
    cc = max(cm, cn, 1)
    # per-tile live f32 bytes: x in/out (double buffered) + A/B/V/exp/att temps
    tile_bytes = 4 * b * tile_hw * (4 * c + 8 * cc)
    params = 4 * ((cm + 2 * cn + c) * max(c, cm, 1) + b * cm * cn
                  + cm + 2 * cn + c)
    want = int(1.5 * (tile_bytes + params)) + (16 << 20)
    return int(min(max(want, 32 << 20), vmem_capacity * 3 // 4))


# ----------------------------------------------------------------------------
# Phase 1: accumulate per-batch `gathered` (CM, CN) over HW tiles.
# ----------------------------------------------------------------------------
def _gather_kernel(x_ref, w1_ref, b1_ref, w2_ref, b2_ref, g_ref):
    """x_ref: (B, C, P) tile (HW in lanes); g_ref: (B, CM, CN) resident accumulator."""
    @pl.when(pl.program_id(0) == 0)
    def _init():
        g_ref[...] = jnp.zeros_like(g_ref)

    Bn, _, P = x_ref.shape
    CM = w1_ref.shape[0]
    CN = w2_ref.shape[0]

    w1 = w1_ref[...]
    w2 = w2_ref[...]
    # Broadcast biases to tile shape once (JAX does not CSE broadcast_in_dim).
    b1 = jnp.broadcast_to(b1_ref[...], (CM, P))
    b2 = jnp.broadcast_to(b2_ref[...], (CN, P))

    a_list, s_list = [], []
    for i in range(Bn):                                   # tiny static batch unroll
        xi = x_ref[i].astype(jnp.float32)                 # (C, P)
        a_list.append(jnp.dot(w1, xi, preferred_element_type=jnp.float32) + b1)
        s_list.append(jnp.dot(w2, xi, preferred_element_type=jnp.float32) + b2)

    # Softmax over dim 0 (the batch) == PyTorch implicit-dim F.softmax on 3-D.
    m = s_list[0]
    for t in s_list[1:]:
        m = jnp.maximum(m, t)
    e_list = [jnp.exp(t - m) for t in s_list]
    denom = e_list[0]
    for e in e_list[1:]:
        denom = denom + e
    inv = pl.reciprocal(denom, approx=True)               # EUP slot, not VALU

    for i in range(Bn):
        att = e_list[i] * inv                             # (CN, P)
        # gathered[m, n] += sum_p A[m, p] * att[n, p]
        g_ref[i] = g_ref[i] + jax.lax.dot_general(
            a_list[i], att,
            dimension_numbers=(((1,), (1,)), ((), ())),
            preferred_element_type=jnp.float32)


# ----------------------------------------------------------------------------
# Phase 2: att_vecs softmax, distribute, 1x1 output conv, residual.
# ----------------------------------------------------------------------------
def _distribute_kernel(x_ref, g_ref, w3_ref, b3_ref, wo_ref, bo_ref, o_ref):
    """x_ref/o_ref: (B, C, P); g_ref: (B, CM, CN) resident (constant index map)."""
    Bn, _, P = x_ref.shape
    CN = w3_ref.shape[0]
    C = wo_ref.shape[0]

    w3 = w3_ref[...]
    wo = wo_ref[...]
    b3 = jnp.broadcast_to(b3_ref[...], (CN, P))
    bo = jnp.broadcast_to(bo_ref[...], (C, P))

    v_list = []
    for i in range(Bn):
        xi = x_ref[i].astype(jnp.float32)
        v_list.append(jnp.dot(w3, xi, preferred_element_type=jnp.float32) + b3)

    m = v_list[0]
    for t in v_list[1:]:
        m = jnp.maximum(m, t)
    e_list = [jnp.exp(t - m) for t in v_list]
    denom = e_list[0]
    for e in e_list[1:]:
        denom = denom + e
    inv = pl.reciprocal(denom, approx=True)

    for i in range(Bn):
        att_v = e_list[i] * inv                                           # (CN, P)
        dist = jnp.dot(g_ref[i], att_v, preferred_element_type=jnp.float32)  # (CM, P)
        out_i = jnp.dot(wo, dist, preferred_element_type=jnp.float32) + bo   # (C, P)
        # Re-read x for the residual instead of carrying it (short live range).
        o_ref[i] = (x_ref[i].astype(jnp.float32) + out_i).astype(o_ref.dtype)


# ----------------------------------------------------------------------------
# Wrapper.
# ----------------------------------------------------------------------------
@functools.partial(jax.jit, static_argnames=("max_tile_hw",))
def a2network_forward(x_nchw, w1, b1, w2, b2, w3, b3, wo, bo, *, max_tile_hw=None):
    """PyTorch-shaped params: w1 (cm,c), w2/w3 (cn,c), wo (c,cm); biases 1-D."""
    b, c, h, w = x_nchw.shape
    hw = h * w
    cm = w1.shape[0]
    cn = w2.shape[0]

    vmem_capacity = _vmem_capacity_bytes()
    tile_hw = _pick_tile_hw(hw, b, c, cm, cn, vmem_capacity, max_tile_hw)
    assert hw % tile_hw == 0
    num_tiles = hw // tile_hw
    vmem_limit = _vmem_limit_bytes(b, c, cm, cn, tile_hw, vmem_capacity)

    # Channels-first, flattened spatial: free bitcast, HW in the lane dimension.
    x_flat = x_nchw.reshape(b, c, hw)
    b1c = b1.reshape(-1, 1)
    b2c = b2.reshape(-1, 1)
    b3c = b3.reshape(-1, 1)
    boc = bo.reshape(-1, 1)

    x_spec = pl.BlockSpec((b, c, tile_hw), lambda t: (0, 0, t))

    def const_spec(shape):
        # Constant index map -> DMA'd once, stays VMEM-resident across all tiles.
        return pl.BlockSpec(shape, lambda t: tuple(0 for _ in shape))

    # Phase 1: HW-tile reduction into `gathered`.
    # TODO(synk): emit per-core partial accumulators (+ wrapper sum) so phase 1
    # can also be core-parallel on v7x; currently only phase 2 uses both TCs.
    gathered = pl.pallas_call(
        _gather_kernel,
        out_shape=jax.ShapeDtypeStruct((b, cm, cn), jnp.float32),
        grid=(num_tiles,),
        in_specs=[
            x_spec,
            const_spec((cm, c)), const_spec((cm, 1)),
            const_spec((cn, c)), const_spec((cn, 1)),
        ],
        out_specs=pl.BlockSpec((b, cm, cn), lambda t: (0, 0, 0)),
        compiler_params=pltpu.CompilerParams(
            dimension_semantics=("arbitrary",),          # reduction over HW tiles
            vmem_limit_bytes=vmem_limit),
    )(x_flat, w1, b1c, w2, b2c)

    # Phase 2: independent HW tiles -> residual output.
    # input_output_aliases={0: 0} deliberately omitted: x_flat aliases the
    # non-donated jit parameter, so aliasing would force a defensive copy of x.
    out_flat = pl.pallas_call(
        _distribute_kernel,
        out_shape=jax.ShapeDtypeStruct((b, c, hw), x_nchw.dtype),
        grid=(num_tiles,),
        in_specs=[
            x_spec,
            pl.BlockSpec((b, cm, cn), lambda t: (0, 0, 0)),
            const_spec((cn, c)), const_spec((cn, 1)),
            const_spec((c, cm)), const_spec((c, 1)),
        ],
        out_specs=x_spec,
        compiler_params=pltpu.CompilerParams(
            dimension_semantics=("parallel",),           # use both TCs on v7x
            vmem_limit_bytes=vmem_limit),
    )(x_flat, gathered, w3, b3c, wo, boc)

    return out_flat.reshape(b, c, h, w)


# ----------------------------------------------------------------------------
# Pure-JAX mirror of the PyTorch forward (NCHW), for verification.
# ----------------------------------------------------------------------------
def reference_forward(x, w1, b1, w2, b2, w3, b3, wo, bo):
    b, c, h, w = x.shape
    xf = x.reshape(b, c, h * w)

    def conv1x1(wt, bias):
        return jnp.einsum('oc,bcp->bop', wt, xf) + bias[None, :, None]

    A = conv1x1(w1, b1)                                   # (b, cm, hw)
    Bm = conv1x1(w2, b2)                                  # (b, cn, hw)
    V = conv1x1(w3, b3)                                   # (b, cn, hw)
    att_maps = jax.nn.softmax(Bm, axis=0)                 # implicit dim -> 0
    att_vecs = jax.nn.softmax(V, axis=0)
    gathered = jnp.einsum('bmp,bnp->bmn', A, att_maps)    # (b, cm, cn)
    distributed = jnp.einsum('bmn,bnp->bmp', gathered, att_vecs)  # (b, cm, hw)
    out = jnp.einsum('om,bmp->bop', wo, distributed) + bo[None, :, None]
    return x + out.reshape(b, c, h, w)


if __name__ == "__main__":
    batch, in_features, H, W = 2, 4, 16, 16
    cm, cn = 4, 4

    key = jax.random.PRNGKey(0)
    ks = jax.random.split(key, 9)
    w1 = jax.random.normal(ks[0], (cm, in_features), jnp.float32) * 0.1
    b1 = jax.random.normal(ks[1], (cm,), jnp.float32) * 0.1
    w2 = jax.random.normal(ks[2], (cn, in_features), jnp.float32) * 0.1
    b2 = jax.random.normal(ks[3], (cn,), jnp.float32) * 0.1
    w3 = jax.random.normal(ks[4], (cn, in_features), jnp.float32) * 0.1
    b3 = jax.random.normal(ks[5], (cn,), jnp.float32) * 0.1
    wo = jax.random.normal(ks[6], (in_features, cm), jnp.float32) * 0.1
    bo = jax.random.normal(ks[7], (in_features,), jnp.float32) * 0.1
    x = jax.random.normal(ks[8], (batch, in_features, H, W), jnp.float32)

    ref = jax.block_until_ready(
        reference_forward(x, w1, b1, w2, b2, w3, b3, wo, bo))
    scale = float(jnp.max(jnp.abs(ref)))

    # Exercise both the multi-tile grid (2 HW tiles) and the auto-sized path.
    for max_tile in (128, None):
        out = a2network_forward(x, w1, b1, w2, b2, w3, b3, wo, bo,
                                max_tile_hw=max_tile)
        out = jax.block_until_ready(out)
        assert out.shape == x.shape and out.dtype == x.dtype
        # pl.reciprocal(approx=True) in the softmax normalization introduces a
        # small relative error that the HW-sized `gathered` reduction amplifies,
        # so compare against the output's dynamic range rather than tight rtol.
        err = float(jnp.max(jnp.abs(out - ref)))
        assert err <= 5e-3 * scale + 1e-5, (
            f"mismatch vs reference: err={err}, scale={scale}, tile={max_tile}")

    print("KERNEL_OK")
</pallas_src>

<mosaic_0001>
module attributes {stable_mosaic.version = 11 : i64} {
  func.func @_distribute_kernel(%arg0: i32, %arg1: memref<2x4x128xf32, #tpu.memory_space<vmem>>, %arg2: memref<2x4x4xf32, #tpu.memory_space<vmem>>, %arg3: memref<4x4xf32, #tpu.memory_space<vmem>>, %arg4: memref<4x1xf32, #tpu.memory_space<vmem>>, %arg5: memref<4x4xf32, #tpu.memory_space<vmem>>, %arg6: memref<4x1xf32, #tpu.memory_space<vmem>>, %arg7: memref<2x4x128xf32, #tpu.memory_space<vmem>>) attributes {dimension_semantics = [#tpu.dimension_semantics<parallel>], iteration_bounds = array<i64: 2>, scalar_prefetch = 0 : i64, scratch_operands = 0 : i64, tpu.core_type = #tpu.core_type<tc>, window_params = [{transform_indices = @transform_0, window_bounds = array<i64: 2, 4, 128>}, {pipeline_mode = #tpu.pipeline_mode<synchronous>, transform_indices = @transform_1, window_bounds = array<i64: 2, 4, 4>}, {pipeline_mode = #tpu.pipeline_mode<synchronous>, transform_indices = @transform_2, window_bounds = array<i64: 4, 4>}, {pipeline_mode = #tpu.pipeline_mode<synchronous>, transform_indices = @transform_3, window_bounds = array<i64: 4, 1>}, {pipeline_mode = #tpu.pipeline_mode<synchronous>, transform_indices = @transform_4, window_bounds = array<i64: 4, 4>}, {pipeline_mode = #tpu.pipeline_mode<synchronous>, transform_indices = @transform_5, window_bounds = array<i64: 4, 1>}, {transform_indices = @transform_6, window_bounds = array<i64: 2, 4, 128>}]} {
    %c0 = arith.constant 0 : index
    %c0_0 = arith.constant 0 : index
    %0 = vector.load %arg3[%c0, %c0_0] : memref<4x4xf32, #tpu.memory_space<vmem>>, vector<4x4xf32>
    %c0_1 = arith.constant 0 : index
    %c0_2 = arith.constant 0 : index
    %1 = vector.load %arg5[%c0_1, %c0_2] : memref<4x4xf32, #tpu.memory_space<vmem>>, vector<4x4xf32>
    %c0_3 = arith.constant 0 : index
    %c0_4 = arith.constant 0 : index
    %2 = vector.load %arg4[%c0_3, %c0_4] : memref<4x1xf32, #tpu.memory_space<vmem>>, vector<4x1xf32>
    %3 = vector.shape_cast %2 : vector<4x1xf32> to vector<4x1xf32>
    %4 = vector.broadcast %3 : vector<4x1xf32> to vector<4x128xf32>
    %c0_5 = arith.constant 0 : index
    %c0_6 = arith.constant 0 : index
    %5 = vector.load %arg6[%c0_5, %c0_6] : memref<4x1xf32, #tpu.memory_space<vmem>>, vector<4x1xf32>
    %6 = vector.shape_cast %5 : vector<4x1xf32> to vector<4x1xf32>
    %7 = vector.broadcast %6 : vector<4x1xf32> to vector<4x128xf32>
    %c0_7 = arith.constant 0 : index
    %c0_8 = arith.constant 0 : index
    %c0_9 = arith.constant 0 : index
    %8 = vector.load %arg1[%c0_7, %c0_8, %c0_9] : memref<2x4x128xf32, #tpu.memory_space<vmem>>, vector<1x4x128xf32>
    %9 = vector.shape_cast %8 : vector<1x4x128xf32> to vector<4x128xf32>
    %cst = arith.constant dense<0.000000e+00> : vector<4x128xf32>
    %10 = tpu.matmul %0, %9, %cst {dimension_numbers = #tpu.dot_dimension_numbers<[1], [0], [0], [1], [0, 0, 1, 1], [], []>} : vector<4x4xf32>, vector<4x128xf32>, vector<4x128xf32> -> vector<4x128xf32>
    %11 = arith.addf %10, %4 : vector<4x128xf32>
    %c1 = arith.constant 1 : index
    %c0_10 = arith.constant 0 : index
    %c0_11 = arith.constant 0 : index
    %12 = vector.load %arg1[%c1, %c0_10, %c0_11] : memref<2x4x128xf32, #tpu.memory_space<vmem>>, vector<1x4x128xf32>
    %13 = vector.shape_cast %12 : vector<1x4x128xf32> to vector<4x128xf32>
    %cst_12 = arith.constant dense<0.000000e+00> : vector<4x128xf32>
    %14 = tpu.matmul %0, %13, %cst_12 {dimension_numbers = #tpu.dot_dimension_numbers<[1], [0], [0], [1], [0, 0, 1, 1], [], []>} : vector<4x4xf32>, vector<4x128xf32>, vector<4x128xf32> -> vector<4x128xf32>
    %15 = arith.addf %14, %4 : vector<4x128xf32>
    %16 = arith.maximumf %11, %15 : vector<4x128xf32>
    %17 = arith.subf %11, %16 : vector<4x128xf32>
    %18 = math.exp %17 : vector<4x128xf32>
    %19 = arith.subf %15, %16 : vector<4x128xf32>
    %20 = math.exp %19 : vector<4x128xf32>
    %21 = arith.addf %18, %20 : vector<4x128xf32>
    %22 = tpu.reciprocal %21 {approx = true} : vector<4x128xf32> -> vector<4x128xf32>
    %23 = arith.mulf %18, %22 : vector<4x128xf32>
    %c0_13 = arith.constant 0 : index
    %c0_14 = arith.constant 0 : index
    %c0_15 = arith.constant 0 : index
    %24 = vector.load %arg2[%c0_13, %c0_14, %c0_15] : memref<2x4x4xf32, #tpu.memory_space<vmem>>, vector<1x4x4xf32>
    %25 = vector.shape_cast %24 : vector<1x4x4xf32> to vector<4x4xf32>
    %cst_16 = arith.constant dense<0.000000e+00> : vector<4x128xf32>
    %26 = tpu.matmul %25, %23, %cst_16 {dimension_numbers = #tpu.dot_dimension_numbers<[1], [0], [0], [1], [0, 0, 1, 1], [], []>} : vector<4x4xf32>, vector<4x128xf32>, vector<4x128xf32> -> vector<4x128xf32>
    %cst_17 = arith.constant dense<0.000000e+00> : vector<4x128xf32>
    %27 = tpu.matmul %1, %26, %cst_17 {dimension_numbers = #tpu.dot_dimension_numbers<[1], [0], [0], [1], [0, 0, 1, 1], [], []>} : vector<4x4xf32>, vector<4x128xf32>, vector<4x128xf32> -> vector<4x128xf32>
    %28 = arith.addf %27, %7 : vector<4x128xf32>
    %c0_18 = arith.constant 0 : index
    %c0_19 = arith.constant 0 : index
    %c0_20 = arith.constant 0 : index
    %29 = vector.load %arg1[%c0_18, %c0_19, %c0_20] : memref<2x4x128xf32, #tpu.memory_space<vmem>>, vector<1x4x128xf32>
    %30 = vector.shape_cast %29 : vector<1x4x128xf32> to vector<4x128xf32>
    %31 = arith.addf %30, %28 : vector<4x128xf32>
    %c0_21 = arith.constant 0 : index
    %c0_22 = arith.constant 0 : index
    %c0_23 = arith.constant 0 : index
    %32 = vector.load %arg7[%c0_21, %c0_22, %c0_23] : memref<2x4x128xf32, #tpu.memory_space<vmem>>, vector<1x4x128xf32>
    %33 = vector.shape_cast %32 : vector<1x4x128xf32> to vector<4x128xf32>
    %34 = vector.shape_cast %31 : vector<4x128xf32> to vector<1x4x128xf32>
    tpu.vector_store %arg7[%c0_21, %c0_22, %c0_23], %34 {strides = array<i32>} : memref<2x4x128xf32, #tpu.memory_space<vmem>>, vector<1x4x128xf32>,
    %35 = arith.mulf %20, %22 : vector<4x128xf32>
    %c1_24 = arith.constant 1 : index
    %c0_25 = arith.constant 0 : index
    %c0_26 = arith.constant 0 : index
    %36 = vector.load %arg2[%c1_24, %c0_25, %c0_26] : memref<2x4x4xf32, #tpu.memory_space<vmem>>, vector<1x4x4xf32>
    %37 = vector.shape_cast %36 : vector<1x4x4xf32> to vector<4x4xf32>
    %cst_27 = arith.constant dense<0.000000e+00> : vector<4x128xf32>
    %38 = tpu.matmul %37, %35, %cst_27 {dimension_numbers = #tpu.dot_dimension_numbers<[1], [0], [0], [1], [0, 0, 1, 1], [], []>} : vector<4x4xf32>, vector<4x128xf32>, vector<4x128xf32> -> vector<4x128xf32>
    %cst_28 = arith.constant dense<0.000000e+00> : vector<4x128xf32>
    %39 = tpu.matmul %1, %38, %cst_28 {dimension_numbers = #tpu.dot_dimension_numbers<[1], [0], [0], [1], [0, 0, 1, 1], [], []>} : vector<4x4xf32>, vector<4x128xf32>, vector<4x128xf32> -> vector<4x128xf32>
    %40 = arith.addf %39, %7 : vector<4x128xf32>
    %c1_29 = arith.constant 1 : index
    %c0_30 = arith.constant 0 : index
    %c0_31 = arith.constant 0 : index
    %41 = vector.load %arg1[%c1_29, %c0_30, %c0_31] : memref<2x4x128xf32, #tpu.memory_space<vmem>>, vector<1x4x128xf32>
    %42 = vector.shape_cast %41 : vector<1x4x128xf32> to vector<4x128xf32>
    %43 = arith.addf %42, %40 : vector<4x128xf32>
    %c1_32 = arith.constant 1 : index
    %c0_33 = arith.constant 0 : index
    %c0_34 = arith.constant 0 : index
    %44 = vector.load %arg7[%c1_32, %c0_33, %c0_34] : memref<2x4x128xf32, #tpu.memory_space<vmem>>, vector<1x4x128xf32>
    %45 = vector.shape_cast %44 : vector<1x4x128xf32> to vector<4x128xf32>
    %46 = vector.shape_cast %43 : vector<4x128xf32> to vector<1x4x128xf32>
    tpu.vector_store %arg7[%c1_32, %c0_33, %c0_34], %46 {strides = array<i32>} : memref<2x4x128xf32, #tpu.memory_space<vmem>>, vector<1x4x128xf32>,
    return
  }
  func.func @transform_0(%arg0: i32) -> (i32, i32, i32) {
    %c0_i32 = arith.constant 0 : i32
    %c0_i32_0 = arith.constant 0 : i32
    %c0_i32_1 = arith.constant 0 : i32
    return %c0_i32, %c0_i32_0, %arg0 : i32, i32, i32
  }
  func.func @transform_1(%arg0: i32) -> (i32, i32, i32) {
    %c0_i32 = arith.constant 0 : i32
    %c0_i32_0 = arith.constant 0 : i32
    %c0_i32_1 = arith.constant 0 : i32
    %c0_i32_2 = arith.constant 0 : i32
    return %c0_i32, %c0_i32_0, %c0_i32_1 : i32, i32, i32
  }
  func.func @transform_2(%arg0: i32) -> (i32, i32) {
    %c0_i32 = arith.constant 0 : i32
    %c0_i32_0 = arith.constant 0 : i32
    %c0_i32_1 = arith.constant 0 : i32
    return %c0_i32, %c0_i32_0 : i32, i32
  }
  func.func @transform_3(%arg0: i32) -> (i32, i32) {
    %c0_i32 = arith.constant 0 : i32
    %c0_i32_0 = arith.constant 0 : i32
    %c0_i32_1 = arith.constant 0 : i32
    return %c0_i32, %c0_i32_0 : i32, i32
  }
  func.func @transform_4(%arg0: i32) -> (i32, i32) {
    %c0_i32 = arith.constant 0 : i32
    %c0_i32_0 = arith.constant 0 : i32
    %c0_i32_1 = arith.constant 0 : i32
    return %c0_i32, %c0_i32_0 : i32, i32
  }
  func.func @transform_5(%arg0: i32) -> (i32, i32) {
    %c0_i32 = arith.constant 0 : i32
    %c0_i32_0 = arith.constant 0 : i32
    %c0_i32_1 = arith.constant 0 : i32
    return %c0_i32, %c0_i32_0 : i32, i32
  }
  func.func @transform_6(%arg0: i32) -> (i32, i32, i32) {
    %c0_i32 = arith.constant 0 : i32
    %c0_i32_0 = arith.constant 0 : i32
    %c0_i32_1 = arith.constant 0 : i32
    return %c0_i32, %c0_i32_0, %arg0 : i32, i32, i32
  }
}

module attributes {stable_mosaic.version = 11 : i64} {
  func.func @_gather_kernel(%arg0: i32, %arg1: memref<2x4x128xf32, #tpu.memory_space<vmem>>, %arg2: memref<4x4xf32, #tpu.memory_space<vmem>>, %arg3: memref<4x1xf32, #tpu.memory_space<vmem>>, %arg4: memref<4x4xf32, #tpu.memory_space<vmem>>, %arg5: memref<4x1xf32, #tpu.memory_space<vmem>>, %arg6: memref<2x4x4xf32, #tpu.memory_space<vmem>>) attributes {dimension_semantics = [#tpu.dimension_semantics<arbitrary>], iteration_bounds = array<i64: 2>, scalar_prefetch = 0 : i64, scratch_operands = 0 : i64, tpu.core_type = #tpu.core_type<tc>, window_params = [{transform_indices = @transform_0, window_bounds = array<i64: 2, 4, 128>}, {pipeline_mode = #tpu.pipeline_mode<synchronous>, transform_indices = @transform_1, window_bounds = array<i64: 4, 4>}, {pipeline_mode = #tpu.pipeline_mode<synchronous>, transform_indices = @transform_2, window_bounds = array<i64: 4, 1>}, {pipeline_mode = #tpu.pipeline_mode<synchronous>, transform_indices = @transform_3, window_bounds = array<i64: 4, 4>}, {pipeline_mode = #tpu.pipeline_mode<synchronous>, transform_indices = @transform_4, window_bounds = array<i64: 4, 1>}, {pipeline_mode = #tpu.pipeline_mode<synchronous>, transform_indices = @transform_5, window_bounds = array<i64: 2, 4, 4>}]} {
    %c0_i32 = arith.constant 0 : i32
    %0 = arith.cmpi eq, %arg0, %c0_i32 : i32
    %1 = arith.extui %0 : i1 to i32
    %c0_i32_0 = arith.constant 0 : i32
    %2 = arith.cmpi ne, %1, %c0_i32_0 : i32
    scf.if %2 {
      %cst_30 = arith.constant 0.000000e+00 : f32
      %46 = vector.broadcast %cst_30 : f32 to vector<2x4x4xf32>
      %c0_31 = arith.constant 0 : index
      %c0_32 = arith.constant 0 : index
      %c0_33 = arith.constant 0 : index
      %47 = vector.load %arg6[%c0_31, %c0_32, %c0_33] : memref<2x4x4xf32, #tpu.memory_space<vmem>>, vector<2x4x4xf32>
      tpu.vector_store %arg6[%c0_31, %c0_32, %c0_33], %46 {strides = array<i32>} : memref<2x4x4xf32, #tpu.memory_space<vmem>>, vector<2x4x4xf32>,
    } else {
    }
    %c0 = arith.constant 0 : index
    %c0_1 = arith.constant 0 : index
    %3 = vector.load %arg2[%c0, %c0_1] : memref<4x4xf32, #tpu.memory_space<vmem>>, vector<4x4xf32>
    %c0_2 = arith.constant 0 : index
    %c0_3 = arith.constant 0 : index
    %4 = vector.load %arg4[%c0_2, %c0_3] : memref<4x4xf32, #tpu.memory_space<vmem>>, vector<4x4xf32>
    %c0_4 = arith.constant 0 : index
    %c0_5 = arith.constant 0 : index
    %5 = vector.load %arg3[%c0_4, %c0_5] : memref<4x1xf32, #tpu.memory_space<vmem>>, vector<4x1xf32>
    %6 = vector.shape_cast %5 : vector<4x1xf32> to vector<4x1xf32>
    %7 = vector.broadcast %6 : vector<4x1xf32> to vector<4x128xf32>
    %c0_6 = arith.constant 0 : index
    %c0_7 = arith.constant 0 : index
    %8 = vector.load %arg5[%c0_6, %c0_7] : memref<4x1xf32, #tpu.memory_space<vmem>>, vector<4x1xf32>
    %9 = vector.shape_cast %8 : vector<4x1xf32> to vector<4x1xf32>
    %10 = vector.broadcast %9 : vector<4x1xf32> to vector<4x128xf32>
    %c0_8 = arith.constant 0 : index
    %c0_9 = arith.constant 0 : index
    %c0_10 = arith.constant 0 : index
    %11 = vector.load %arg1[%c0_8, %c0_9, %c0_10] : memref<2x4x128xf32, #tpu.memory_space<vmem>>, vector<1x4x128xf32>
    %12 = vector.shape_cast %11 : vector<1x4x128xf32> to vector<4x128xf32>
    %cst = arith.constant dense<0.000000e+00> : vector<4x128xf32>
    %13 = tpu.matmul %3, %12, %cst {dimension_numbers = #tpu.dot_dimension_numbers<[1], [0], [0], [1], [0, 0, 1, 1], [], []>} : vector<4x4xf32>, vector<4x128xf32>, vector<4x128xf32> -> vector<4x128xf32>
    %14 = arith.addf %13, %7 : vector<4x128xf32>
    %cst_11 = arith.constant dense<0.000000e+00> : vector<4x128xf32>
    %15 = tpu.matmul %4, %12, %cst_11 {dimension_numbers = #tpu.dot_dimension_numbers<[1], [0], [0], [1], [0, 0, 1, 1], [], []>} : vector<4x4xf32>, vector<4x128xf32>, vector<4x128xf32> -> vector<4x128xf32>
    %16 = arith.addf %15, %10 : vector<4x128xf32>
    %c1 = arith.constant 1 : index
    %c0_12 = arith.constant 0 : index
    %c0_13 = arith.constant 0 : index
    %17 = vector.load %arg1[%c1, %c0_12, %c0_13] : memref<2x4x128xf32, #tpu.memory_space<vmem>>, vector<1x4x128xf32>
    %18 = vector.shape_cast %17 : vector<1x4x128xf32> to vector<4x128xf32>
    %cst_14 = arith.constant dense<0.000000e+00> : vector<4x128xf32>
    %19 = tpu.matmul %3, %18, %cst_14 {dimension_numbers = #tpu.dot_dimension_numbers<[1], [0], [0], [1], [0, 0, 1, 1], [], []>} : vector<4x4xf32>, vector<4x128xf32>, vector<4x128xf32> -> vector<4x128xf32>
    %20 = arith.addf %19, %7 : vector<4x128xf32>
    %cst_15 = arith.constant dense<0.000000e+00> : vector<4x128xf32>
    %21 = tpu.matmul %4, %18, %cst_15 {dimension_numbers = #tpu.dot_dimension_numbers<[1], [0], [0], [1], [0, 0, 1, 1], [], []>} : vector<4x4xf32>, vector<4x128xf32>, vector<4x128xf32> -> vector<4x128xf32>
    %22 = arith.addf %21, %10 : vector<4x128xf32>
    %23 = arith.maximumf %16, %22 : vector<4x128xf32>
    %24 = arith.subf %16, %23 : vector<4x128xf32>
    %25 = math.exp %24 : vector<4x128xf32>
    %26 = arith.subf %22, %23 : vector<4x128xf32>
    %27 = math.exp %26 : vector<4x128xf32>
    %28 = arith.addf %25, %27 : vector<4x128xf32>
    %29 = tpu.reciprocal %28 {approx = true} : vector<4x128xf32> -> vector<4x128xf32>
    %30 = arith.mulf %25, %29 : vector<4x128xf32>
    %c0_16 = arith.constant 0 : index
    %c0_17 = arith.constant 0 : index
    %c0_18 = arith.constant 0 : index
    %31 = vector.load %arg6[%c0_16, %c0_17, %c0_18] : memref<2x4x4xf32, #tpu.memory_space<vmem>>, vector<1x4x4xf32>
    %32 = vector.shape_cast %31 : vector<1x4x4xf32> to vector<4x4xf32>
    %cst_19 = arith.constant dense<0.000000e+00> : vector<4x4xf32>
    %33 = tpu.matmul %14, %30, %cst_19 {dimension_numbers = #tpu.dot_dimension_numbers<[1], [1], [0], [0], [0, 0, 1, 0], [], []>} : vector<4x128xf32>, vector<4x128xf32>, vector<4x4xf32> -> vector<4x4xf32>
    %34 = arith.addf %32, %33 : vector<4x4xf32>
    %c0_20 = arith.constant 0 : index
    %c0_21 = arith.constant 0 : index
    %c0_22 = arith.constant 0 : index
    %35 = vector.load %arg6[%c0_20, %c0_21, %c0_22] : memref<2x4x4xf32, #tpu.memory_space<vmem>>, vector<1x4x4xf32>
    %36 = vector.shape_cast %35 : vector<1x4x4xf32> to vector<4x4xf32>
    %37 = vector.shape_cast %34 : vector<4x4xf32> to vector<1x4x4xf32>
    tpu.vector_store %arg6[%c0_20, %c0_21, %c0_22], %37 {strides = array<i32>} : memref<2x4x4xf32, #tpu.memory_space<vmem>>, vector<1x4x4xf32>,
    %38 = arith.mulf %27, %29 : vector<4x128xf32>
    %c1_23 = arith.constant 1 : index
    %c0_24 = arith.constant 0 : index
    %c0_25 = arith.constant 0 : index
    %39 = vector.load %arg6[%c1_23, %c0_24, %c0_25] : memref<2x4x4xf32, #tpu.memory_space<vmem>>, vector<1x4x4xf32>
    %40 = vector.shape_cast %39 : vector<1x4x4xf32> to vector<4x4xf32>
    %cst_26 = arith.constant dense<0.000000e+00> : vector<4x4xf32>
    %41 = tpu.matmul %20, %38, %cst_26 {dimension_numbers = #tpu.dot_dimension_numbers<[1], [1], [0], [0], [0, 0, 1, 0], [], []>} : vector<4x128xf32>, vector<4x128xf32>, vector<4x4xf32> -> vector<4x4xf32>
    %42 = arith.addf %40, %41 : vector<4x4xf32>
    %c1_27 = arith.constant 1 : index
    %c0_28 = arith.constant 0 : index
    %c0_29 = arith.constant 0 : index
    %43 = vector.load %arg6[%c1_27, %c0_28, %c0_29] : memref<2x4x4xf32, #tpu.memory_space<vmem>>, vector<1x4x4xf32>
    %44 = vector.shape_cast %43 : vector<1x4x4xf32> to vector<4x4xf32>
    %45 = vector.shape_cast %42 : vector<4x4xf32> to vector<1x4x4xf32>
    tpu.vector_store %arg6[%c1_27, %c0_28, %c0_29], %45 {strides = array<i32>} : memref<2x4x4xf32, #tpu.memory_space<vmem>>, vector<1x4x4xf32>,
    return
  }
  func.func @transform_0(%arg0: i32) -> (i32, i32, i32) {
    %c0_i32 = arith.constant 0 : i32
    %c0_i32_0 = arith.constant 0 : i32
    %c0_i32_1 = arith.constant 0 : i32
    return %c0_i32, %c0_i32_0, %arg0 : i32, i32, i32
  }
  func.func @transform_1(%arg0: i32) -> (i32, i32) {
    %c0_i32 = arith.constant 0 : i32
    %c0_i32_0 = arith.constant 0 : i32
    %c0_i32_1 = arith.constant 0 : i32
    return %c0_i32, %c0_i32_0 : i32, i32
  }
  func.func @transform_2(%arg0: i32) -> (i32, i32) {
    %c0_i32 = arith.constant 0 : i32
    %c0_i32_0 = arith.constant 0 : i32
    %c0_i32_1 = arith.constant 0 : i32
    return %c0_i32, %c0_i32_0 : i32, i32
  }
  func.func @transform_3(%arg0: i32) -> (i32, i32) {
    %c0_i32 = arith.constant 0 : i32
    %c0_i32_0 = arith.constant 0 : i32
    %c0_i32_1 = arith.constant 0 : i32
    return %c0_i32, %c0_i32_0 : i32, i32
  }
  func.func @transform_4(%arg0: i32) -> (i32, i32) {
    %c0_i32 = arith.constant 0 : i32
    %c0_i32_0 = arith.constant 0 : i32
    %c0_i32_1 = arith.constant 0 : i32
    return %c0_i32, %c0_i32_0 : i32, i32
  }
  func.func @transform_5(%arg0: i32) -> (i32, i32, i32) {
    %c0_i32 = arith.constant 0 : i32
    %c0_i32_0 = arith.constant 0 : i32
    %c0_i32_1 = arith.constant 0 : i32
    %c0_i32_2 = arith.constant 0 : i32
    return %c0_i32, %c0_i32_0, %c0_i32_1 : i32, i32, i32
  }
}

</mosaic_0001>

<llo_original>
// kernel: a2network_forward.2
$region0: #{a2network_forward.2}
  #allocation0 [shape = 'u32[]', space=smem, size = 0x4, offset = 0x4, fixed_abs, tag = 'smem constant byte address 0x4 - core index']
  #allocation1 [shape = 'u32[144,128]{1,0:T(1,128)}', space=vmem, size = 0x12000, scoped, tag = 'internal scratch']
  %s0 = inlined_call_operand.vmem [shape: f32[2,4,256], index: 0, kind: input, shape index: {}]
  %s1 = inlined_call_operand.vmem [shape: f32[4,4], index: 1, kind: input, shape index: {}]
  %s2 = inlined_call_operand.vmem [shape: f32[4,1], index: 2, kind: input, shape index: {}]
  %s3 = inlined_call_operand.vmem [shape: f32[4,4], index: 3, kind: input, shape index: {}]
  %s4 = inlined_call_operand.vmem [shape: f32[4,1], index: 4, kind: input, shape index: {}]
  %s5 = inlined_call_operand.vmem [shape: f32[2,4,4], index: 5, kind: output, shape index: {}]
  %s6 = sld [smem:[#allocation0]]
  $region98: #{a2network_forward.2} parent=0
    _
  %s8 = ssub.s32 1, %s6
  %s9 = scalar_select 0, %s8, %s6
  $region1: #{a2network_forward.2} parent=0
    #allocation2 [shape = 'u8[8192]{0}', space=vmem, size = 0x2000, scoped, tag = 'input window, operand 0']
    loop: start=0, step=1, limit=4
    $region2: #{a2network_forward.2} parent=1 // loop_pre_header
      _
    $region3: #{a2network_forward.2} parent=1 // loop_header
      %s11 = sphi 0, %s15
      %p12 = scmp.ge.s32.totalorder %s11, 4
      %s21 = sphi 0, %s23
      %s24 = sphi 0, %s21
      %s25 = sphi 0, %s24
      %s41 = sphi 0, %s25
      %s45 = sphi 0, %s45
      %s47 = sphi 0, %s45
      %s48 = sphi 0, %s47
      %s62 = sphi 0, %s48
      %s66 = sphi 0, %s66
      %s68 = sphi 0, %s66
      %s69 = sphi 0, %s68
      %s83 = sphi 0, %s69
      %s87 = sphi 0, %s87
      %s89 = sphi 0, %s87
      %s90 = sphi 0, %s89
      %s104 = sphi 0, %s90
      %s108 = sphi 0, %s108
      %s110 = sphi 0, %s108
      %s111 = sphi 0, %s110
      %s125 = sphi 0, %s111
      %s129 = sphi 0, %s129
      %s131 = sphi 0, %s129
      %s132 = sphi 0, %s131
      %s146 = sphi 0, %s132
    $region4: #{a2network_forward.2} parent=1 // loop_header_branch
      %14 = sbr.rel (%p12) target = $region8
    $region5: #{a2network_forward.2} parent=1 // loop_body
      %s16 = ssub.s32 %s11, 1
      %s17 = ssub.s32 %s11, 2
      %s18 = sadd.s32 %s11, 1
      %s19 = ssub.s32 %s11, %s18
      %p20 = scmp.eq.s32.totalorder %s19, 0
      %s22 = sadd.s32 %s21, 1
      %s23 = scalar_select %p20, %s21, %s22
      %p26 = pneg %p20
      %p27 = scmp.eq.s32.totalorder %s11, 1
      %p28 = por %p26, %p27
      %p29 = scmp.ne.s32.totalorder %s21, %s24
      %p30 = scmp.eq.s32.totalorder %s11, 0
      %p31 = por %p29, %p30
      %p32 = scmp.ne.s32.totalorder %s21, %s24
      %p33 = scmp.eq.s32.totalorder %s16, 1
      %p34 = por %p32, %p33
      %p35 = scmp.ne.s32.totalorder %s24, %s25
      %p36 = scmp.eq.s32.totalorder %s16, 0
      %p37 = por %p35, %p36
      %p38 = scmp.ne.s32.totalorder %s24, %s25
      %p39 = scmp.eq.s32.totalorder %s17, 1
      %p40 = por %p38, %p39
      %p42 = scmp.ne.s32.totalorder %s25, %s41
      %p43 = scmp.eq.s32.totalorder %s17, 0
      %p44 = por %p42, %p43
      %s46 = sadd.s32 %s45, 1
      %p49 = scmp.eq.s32.totalorder %s11, 1
      %p50 = scmp.ne.s32.totalorder %s45, %s47
      %p51 = scmp.eq.s32.totalorder %s11, 0
      %p52 = por %p50, %p51
      %p53 = scmp.ne.s32.totalorder %s45, %s47
      %p54 = scmp.eq.s32.totalorder %s16, 1
      %p55 = por %p53, %p54
      %p56 = scmp.ne.s32.totalorder %s47, %s48
      %p57 = scmp.eq.s32.totalorder %s16, 0
      %p58 = por %p56, %p57
      %p59 = scmp.ne.s32.totalorder %s47, %s48
      %p60 = scmp.eq.s32.totalorder %s17, 1
      %p61 = por %p59, %p60
      %p63 = scmp.ne.s32.totalorder %s48, %s62
      %p64 = scmp.eq.s32.totalorder %s17, 0
      %p65 = por %p63, %p64
      %s67 = sadd.s32 %s66, 1
      %p70 = scmp.eq.s32.totalorder %s11, 1
      %p71 = scmp.ne.s32.totalorder %s66, %s68
      %p72 = scmp.eq.s32.totalorder %s11, 0
      %p73 = por %p71, %p72
      %p74 = scmp.ne.s32.totalorder %s66, %s68
      %p75 = scmp.eq.s32.totalorder %s16, 1
      %p76 = por %p74, %p75
      %p77 = scmp.ne.s32.totalorder %s68, %s69
      %p78 = scmp.eq.s32.totalorder %s16, 0
      %p79 = por %p77, %p78
      %p80 = scmp.ne.s32.totalorder %s68, %s69
      %p81 = scmp.eq.s32.totalorder %s17, 1
      %p82 = por %p80, %p81
      %p84 = scmp.ne.s32.totalorder %s69, %s83
      %p85 = scmp.eq.s32.totalorder %s17, 0
      %p86 = por %p84, %p85
      %s88 = sadd.s32 %s87, 1
      %p91 = scmp.eq.s32.totalorder %s11, 1
      %p92 = scmp.ne.s32.totalorder %s87, %s89
      %p93 = scmp.eq.s32.totalorder %s11, 0
      %p94 = por %p92, %p93
      %p95 = scmp.ne.s32.totalorder %s87, %s89
      %p96 = scmp.eq.s32.totalorder %s16, 1
      %p97 = por %p95, %p96
      %p98 = scmp.ne.s32.totalorder %s89, %s90
      %p99 = scmp.eq.s32.totalorder %s16, 0
      %p100 = por %p98, %p99
      %p101 = scmp.ne.s32.totalorder %s89, %s90
      %p102 = scmp.eq.s32.totalorder %s17, 1
      %p103 = por %p101, %p102
      %p105 = scmp.ne.s32.totalorder %s90, %s104
      %p106 = scmp.eq.s32.totalorder %s17, 0
      %p107 = por %p105, %p106
      %s109 = sadd.s32 %s108, 1
      %p112 = scmp.eq.s32.totalorder %s11, 1
      %p113 = scmp.ne.s32.totalorder %s108, %s110
      %p114 = scmp.eq.s32.totalorder %s11, 0
      %p115 = por %p113, %p114
      %p116 = scmp.ne.s32.totalorder %s108, %s110
      %p117 = scmp.eq.s32.totalorder %s16, 1
      %p118 = por %p116, %p117
      %p119 = scmp.ne.s32.totalorder %s110, %s111
      %p120 = scmp.eq.s32.totalorder %s16, 0
      %p121 = por %p119, %p120
      %p122 = scmp.ne.s32.totalorder %s110, %s111
      %p123 = scmp.eq.s32.totalorder %s17, 1
      %p124 = por %p122, %p123
      %p126 = scmp.ne.s32.totalorder %s111, %s125
      %p127 = scmp.eq.s32.totalorder %s17, 0
      %p128 = por %p126, %p127
      %s130 = sadd.s32 %s129, 1
      %p133 = scmp.eq.s32.totalorder %s11, 1
      %p134 = scmp.ne.s32.totalorder %s129, %s131
      %p135 = scmp.eq.s32.totalorder %s11, 0
      %p136 = por %p134, %p135
      %p137 = scmp.ne.s32.totalorder %s129, %s131
      %p138 = scmp.eq.s32.totalorder %s16, 1
      %p139 = por %p137, %p138
      %p140 = scmp.ne.s32.totalorder %s131, %s132
      %p141 = scmp.eq.s32.totalorder %s16, 0
      %p142 = por %p140, %p141
      %p143 = scmp.ne.s32.totalorder %s131, %s132
      %p144 = scmp.eq.s32.totalorder %s17, 1
      %p145 = por %p143, %p144
      %p147 = scmp.ne.s32.totalorder %s132, %s146
      %p148 = scmp.eq.s32.totalorder %s17, 0
      %p149 = por %p147, %p148
      %p150 = scmp.le.s32.totalorder 1, %s11
      %p151 = scmp.lt.s32.totalorder %s11, 3
      %p152 = pnand %p150, %p151
      %p153 = pneg %p152
      // Predicated region
      $region9: #{a2network_forward.2} parent=5 // pred_check
        _
      $region10: #{a2network_forward.2} parent=5 // pred_check_branch
        %155 = sbr.rel (%p152) target = $region12
      $region11: #{a2network_forward.2} parent=5 // pred_region
        %s156 = ssub.s32 %s11, 1
        // Predicated region
        $region13: #{a2network_forward.2} parent=11 // pred_check
          %p157 = pneg %p58
        $region14: #{a2network_forward.2} parent=11 // pred_check_branch
          %159 = sbr.rel (%p157) target = $region16
        $region15: #{a2network_forward.2} parent=11 // pred_region
          _
        $region16: #{a2network_forward.2} parent=11 // pred_fallthru
          _
        // Predicated region
        $region17: #{a2network_forward.2} parent=11 // pred_check
          %p160 = pneg %p79
        $region18: #{a2network_forward.2} parent=11 // pred_check_branch
          %162 = sbr.rel (%p160) target = $region20
        $region19: #{a2network_forward.2} parent=11 // pred_region
          _
        $region20: #{a2network_forward.2} parent=11 // pred_fallthru
          _
        // Predicated region
        $region21: #{a2network_forward.2} parent=11 // pred_check
          %p163 = pneg %p100
        $region22: #{a2network_forward.2} parent=11 // pred_check_branch
          %165 = sbr.rel (%p163) target = $region24
        $region23: #{a2network_forward.2} parent=11 // pred_region
          _
        $region24: #{a2network_forward.2} parent=11 // pred_fallthru
          _
        // Predicated region
        $region25: #{a2network_forward.2} parent=11 // pred_check
          %p166 = pneg %p121
        $region26: #{a2network_forward.2} parent=11 // pred_check_branch
          %168 = sbr.rel (%p166) target = $region28
        $region27: #{a2network_forward.2} parent=11 // pred_region
          _
        $region28: #{a2network_forward.2} parent=11 // pred_fallthru
          _
      $region12: #{a2network_forward.2} parent=5 // pred_fallthru
        _
      %p169 = scmp.lt.s32.totalorder %s11, 2
      // Predicated region
      $region29: #{a2network_forward.2} parent=5 // pred_check
        %p170 = pneg %p169
      $region30: #{a2network_forward.2} parent=5 // pred_check_branch
        %172 = sbr.rel (%p170) target = $region32
      $region31: #{a2network_forward.2} parent=5 // pred_region
        // Predicated region
        $region33: #{a2network_forward.2} parent=31 // pred_check
          %p173 = pneg %p31
        $region34: #{a2network_forward.2} parent=31 // pred_check_branch
          %175 = sbr.rel (%p173) target = $region36
        $region35: #{a2network_forward.2} parent=31 // pred_region
          %s176 = sand.u32 %s21, 1
          %s177 = sand.u32 %s21, 1
          %s178 = smul.addr %s177, 8
          %s179 = scalar_lea.vmem [#allocation2], %s178
          %s180 = smul.addr %s11, 4
          %s181 = scalar_lea.vmem %s0, %s180
          // Predicated region
          $region37: #{a2network_forward.2} parent=35 // pred_check
            _
          $region38: #{a2network_forward.2} parent=35 // pred_check_branch
            %183 = sbr.rel (0) target = $region40
          $region39: #{a2network_forward.2} parent=35 // pred_region
            // Predicated region
            $region41: #{a2network_forward.2} parent=39 // pred_check
              _
            $region42: #{a2network_forward.2} parent=39 // pred_check_branch
              %185 = sbr.rel target = $region44
            $region43: #{a2network_forward.2} parent=39 // pred_region
              // Predicated region
              $region56: #{a2network_forward.2} parent=43 // pred_check
                _
              $region57: #{a2network_forward.2} parent=43 // pred_check_branch
                %202 = sbr.rel (0) target = $region59
              $region58: #{a2network_forward.2} parent=43 // pred_region
                loop: start=0, step=1, limit=1
                $region60: #{a2network_forward.2} parent=58 // loop_pre_header
                  _
                $region61: #{a2network_forward.2} parent=58 // loop_header
                  %s204 = sphi 0, %s208
                  %p205 = scmp.ge.s32.totalorder %s204, 1
                  %s209 = sphi %s181, %s181
                  %s210 = sphi %s179, %s179
                $region62: #{a2network_forward.2} parent=58 // loop_header_branch
                  %207 = sbr.rel (%p205) target = $region66
                $region63: #{a2network_forward.2} parent=58 // loop_body
                  _
                $region64: #{a2network_forward.2} parent=58 // loop_footer
                  %s208 = sadd.s32 1, %s204
                $region65: #{a2network_forward.2} parent=58 // loop_footer_branch
                  %203 = sbr.rel target = $region61
                $region66: #{a2network_forward.2} parent=58 // loop_exit
                  _
                loop: start=0, step=1, limit=1
                $region67: #{a2network_forward.2} parent=58 // loop_pre_header
                  _
                $region68: #{a2network_forward.2} parent=58 // loop_header
                  %s213 = sphi 0, %s217
                  %p214 = scmp.ge.s32.totalorder %s213, 1
                  %s218 = sphi %s181, %s181
                  %s219 = sphi %s179, %s179
                $region69: #{a2network_forward.2} parent=58 // loop_header_branch
                  %216 = sbr.rel (%p214) target = $region73
                $region70: #{a2network_forward.2} parent=58 // loop_body
                  %v220 = vld [vmem:[%s218] sm:$0xf]
                  %221 = vst [vmem:[%s219] sm:$0xf] %v220
                  %v222 = vld [vmem:[%s218 + $0x8] sm:$0xf]
                  %223 = vst [vmem:[%s219 + $0x4] sm:$0xf] %v222
                $region71: #{a2network_forward.2} parent=58 // loop_footer
                  %s217 = sadd.s32 1, %s213
                $region72: #{a2network_forward.2} parent=58 // loop_footer_branch
                  %212 = sbr.rel target = $region68
                $region73: #{a2network_forward.2} parent=58 // loop_exit
                  _
              $region59: #{a2network_forward.2} parent=43 // pred_fallthru
                _
            $region44: #{a2network_forward.2} parent=39 // pred_fallthru
              _
            // Predicated region
            $region45: #{a2network_forward.2} parent=39 // pred_check
              _
            $region46: #{a2network_forward.2} parent=39 // pred_check_branch
              %187 = sbr.rel (0) target = $region48
            $region47: #{a2network_forward.2} parent=39 // pred_region
              loop: start=0, step=1, limit=1
              $region49: #{a2network_forward.2} parent=47 // loop_pre_header
                _
              $region50: #{a2network_forward.2} parent=47 // loop_header
                %s190 = sphi 0, %s194
                %p191 = scmp.ge.s32.totalorder %s190, 1
                %s195 = sphi %s181, %s181
                %s196 = sphi %s179, %s179
              $region51: #{a2network_forward.2} parent=47 // loop_header_branch
                %193 = sbr.rel (%p191) target = $region55
              $region52: #{a2network_forward.2} parent=47 // loop_body
                %v197 = vld [vmem:[%s195] sm:$0xf]
                %198 = vst [vmem:[%s196] sm:$0xf] %v197
                %v199 = vld [vmem:[%s195 + $0x8] sm:$0xf]
                %200 = vst [vmem:[%s196 + $0x4] sm:$0xf] %v199
              $region53: #{a2network_forward.2} parent=47 // loop_footer
                %s194 = sadd.s32 1, %s190
              $region54: #{a2network_forward.2} parent=47 // loop_footer_branch
                %189 = sbr.rel target = $region50
              $region55: #{a2network_forward.2} parent=47 // loop_exit
                _
            $region48: #{a2network_forward.2} parent=39 // pred_fallthru
              _
          $region40: #{a2network_forward.2} parent=35 // pred_fallthru
            _
          %224 = vnop
        $region36: #{a2network_forward.2} parent=31 // pred_fallthru
          _
      $region32: #{a2network_forward.2} parent=5 // pred_fallthru
        _
      %p225 = scmp.le.s32.totalorder 1, %s11
      %p226 = scmp.lt.s32.totalorder %s11, 3
      %p227 = pnand %p225, %p226
      %p228 = pneg %p227
      // Predicated region
      $region74: #{a2network_forward.2} parent=5 // pred_check
        _
      $region75: #{a2network_forward.2} parent=5 // pred_check_branch
        %230 = sbr.rel (%p227) target = $region77
      $region76: #{a2network_forward.2} parent=5 // pred_region
        %s231 = ssub.s32 %s11, 1
        %s232 = sand.u32 %s24, 1
        %s233 = sand.u32 %s24, 1
        %s234 = smul.addr %s233, 8
        %s235 = scalar_lea.vmem [#allocation2], %s234
        // Predicated region
        $region78: #{a2network_forward.2} parent=76 // pred_check
          %p236 = pneg %p37
        $region79: #{a2network_forward.2} parent=76 // pred_check_branch
          %238 = sbr.rel (%p236) target = $region81
        $region80: #{a2network_forward.2} parent=76 // pred_region
          _
        $region81: #{a2network_forward.2} parent=76 // pred_fallthru
          _
        %s239 = sand.u32 %s24, 1
        %s240 = sand.u32 %s24, 1
        %s241 = smul.addr %s240, 8
        %s242 = scalar_lea.vmem [#allocation2], %s241
        %p243 = pneg %p37
        %p244 = pneg %p34
        %p245 = pneg %p58
        %p246 = pneg %p55
        %p247 = pneg %p79
        %p248 = pneg %p76
        %p249 = pneg %p100
        %p250 = pneg %p97
        %p251 = pneg %p121
        %p252 = pneg %p118
        %p253 = pneg %p142
        %p254 = pneg %p139
        %p255 = scmp.eq.s32.totalorder %s16, 0
        // Predicated region
        $region82: #{a2network_forward.2} parent=76 // pred_check
          %p256 = pneg %p255
        $region83: #{a2network_forward.2} parent=76 // pred_check_branch
          %258 = sbr.rel (%p256) target = $region85
        $region84: #{a2network_forward.2} parent=76 // pred_region
          %vm259 = vcmask 27648
          %260 = vst.msk [vmem:[%s5] sm:$0xf] %vm259, 0.0
          %261 = vst.msk [vmem:[%s5 + $0x4] sm:$0xf] %vm259, 0.0
        $region85: #{a2network_forward.2} parent=76 // pred_fallthru
          _
        %v262 = vld [vmem:[%s1] sm:$0xf]
        %v263 = vld [vmem:[%s3] sm:$0xf]
        %v264 = vld [vmem:[%s2] sm:$0xf]
        %266 = vset.pattern.permute.xlu0 0
        %267 = vperm.xlu0 %266, %v264
        %v268 = vpop.permute.xlu0 %267
        %v270 = vld [vmem:[%s4] sm:$0xf]
        %272 = vset.pattern.permute.xlu0 0
        %273 = vperm.xlu0 %272, %v270
        %v274 = vpop.permute.xlu0 %273
        %v276 = vld [vmem:[%s235] sm:$0xf]
        %vm277 = vcmask 31744
        %v279 = vsel %vm277, %v262, 0
        %vm281 = vcmask 1043456
        %v283 = vsel %vm281, %v276, 0
        %285 = vmatprep.subr.mxu0 0.0
        %286 = vmatpush1.msra.mxu0 %v283
        %287 = vmatprep.subr.mxu0 0.0
        %288 = vmatpush1.msra.mxu0 0.0
        %289 = vmatprep.subr.mxu0 0.0
        %290 = vmatpush1.msra.mxu0 0.0
        %291 = vmatprep.subr.mxu0 0.0
        %292 = vmatpush1.msra.mxu0 0.0
        %293 = vmatprep.subr.mxu0 0.0
        %294 = vmatpush1.msra.mxu0 0.0
        %295 = vmatprep.subr.mxu0 0.0
        %296 = vmatpush1.msra.mxu0 0.0
        %297 = vmatprep.subr.mxu0 0.0
        %298 = vmatpush1.msra.mxu0 0.0
        %299 = vmatprep.subr.mxu0 0.0
        %300 = vmatpush1.msra.mxu0 0.0
        %301 = vmatprep.subr.mxu0 0.0
        %302 = vmatpush1.msra.mxu0 0.0
        %303 = vmatprep.subr.mxu0 0.0
        %304 = vmatpush1.msra.mxu0 0.0
        %305 = vmatprep.subr.mxu0 0.0
        %306 = vmatpush1.msra.mxu0 0.0
        %307 = vmatprep.subr.mxu0 0.0
        %308 = vmatpush1.msra.mxu0 0.0
        %309 = vmatprep.subr.mxu0 0.0
        %310 = vmatpush1.msra.mxu0 0.0
        %311 = vmatprep.subr.mxu0 0.0
        %312 = vmatpush1.msra.mxu0 0.0
        %313 = vmatprep.subr.mxu0 0.0
        %314 = vmatpush1.msra.mxu0 0.0
        %315 = vmatprep.subr.mxu0 0.0
        %316 = vmatpush1.msra.mxu0 0.0
        %317 = vmatprep.subr.mxu0 0.0
        %318 = vmatpush1.msra.mxu0 0.0
        %319 = vmatprep.subr.mxu0 0.0
        %320 = vmatpush1.msra.mxu0 0.0
        %321 = vmatprep.subr.mxu0 0.0
        %322 = vmatpush1.msra.mxu0 0.0
        %323 = vmatprep.subr.mxu0 0.0
        %324 = vmatpush1.msra.mxu0 0.0
        %325 = vmatprep.subr.mxu0 0.0
        %326 = vmatpush1.msra.mxu0 0.0
        %327 = vmatprep.subr.mxu0 0.0
        %328 = vmatpush1.msra.mxu0 0.0
        %329 = vmatprep.subr.mxu0 0.0
        %330 = vmatpush1.msra.mxu0 0.0
        %331 = vmatprep.subr.mxu0 0.0
        %332 = vmatpush1.msra.mxu0 0.0
        %333 = vmatprep.subr.mxu0 0.0
        %334 = vmatpush1.msra.mxu0 0.0
        %335 = vmatprep.subr.mxu0 0.0
        %336 = vmatpush1.msra.mxu0 0.0
        %337 = vmatprep.subr.mxu0 0.0
        %338 = vmatpush1.msra.mxu0 0.0
        %339 = vmatprep.subr.mxu0 0.0
        %340 = vmatpush1.msra.mxu0 0.0
        %341 = vmatprep.subr.mxu0 0.0
        %342 = vmatpush1.msra.mxu0 0.0
        %343 = vmatprep.subr.mxu0 0.0
        %344 = vmatpush1.msra.mxu0 0.0
        %345 = vmatprep.subr.mxu0 0.0
        %346 = vmatpush1.msra.mxu0 0.0
        %347 = vmatprep.subr.mxu0 0.0
        %348 = vmatpush1.msra.mxu0 0.0
        %349 = vmatprep.mubr.f32.mxu0 0.0
        %350 = vmatmul.mubr.f32.gmra.mrb[0].mxu0 %v279
        %v351 = vpop.f32.mrb[0].mxu0
        %v352 = vadd.f32 %v268, %v351
        %v353 = vpop.f32.mrb[0].mxu0
        %354 = vdwg.mxu0
        %v356 = vsel %vm277, %v263, 0
        %358 = vmatprep.subr.mxu0 0.0
        %359 = vmatpush1.msra.mxu0 %v283
        %360 = vmatprep.subr.mxu0 0.0
        %361 = vmatpush1.msra.mxu0 0.0
        %362 = vmatprep.subr.mxu0 0.0
        %363 = vmatpush1.msra.mxu0 0.0
        %364 = vmatprep.subr.mxu0 0.0
        %365 = vmatpush1.msra.mxu0 0.0
        %366 = vmatprep.subr.mxu0 0.0
        %367 = vmatpush1.msra.mxu0 0.0
        %368 = vmatprep.subr.mxu0 0.0
        %369 = vmatpush1.msra.mxu0 0.0
        %370 = vmatprep.subr.mxu0 0.0
        %371 = vmatpush1.msra.mxu0 0.0
        %372 = vmatprep.subr.mxu0 0.0
        %373 = vmatpush1.msra.mxu0 0.0
        %374 = vmatprep.subr.mxu0 0.0
        %375 = vmatpush1.msra.mxu0 0.0
        %376 = vmatprep.subr.mxu0 0.0
        %377 = vmatpush1.msra.mxu0 0.0
        %378 = vmatprep.subr.mxu0 0.0
        %379 = vmatpush1.msra.mxu0 0.0
        %380 = vmatprep.subr.mxu0 0.0
        %381 = vmatpush1.msra.mxu0 0.0
        %382 = vmatprep.subr.mxu0 0.0
        %383 = vmatpush1.msra.mxu0 0.0
        %384 = vmatprep.subr.mxu0 0.0
        %385 = vmatpush1.msra.mxu0 0.0
        %386 = vmatprep.subr.mxu0 0.0
        %387 = vmatpush1.msra.mxu0 0.0
        %388 = vmatprep.subr.mxu0 0.0
        %389 = vmatpush1.msra.mxu0 0.0
        %390 = vmatprep.subr.mxu0 0.0
        %391 = vmatpush1.msra.mxu0 0.0
        %392 = vmatprep.subr.mxu0 0.0
        %393 = vmatpush1.msra.mxu0 0.0
        %394 = vmatprep.subr.mxu0 0.0
        %395 = vmatpush1.msra.mxu0 0.0
        %396 = vmatprep.subr.mxu0 0.0
        %397 = vmatpush1.msra.mxu0 0.0
        %398 = vmatprep.subr.mxu0 0.0
        %399 = vmatpush1.msra.mxu0 0.0
        %400 = vmatprep.subr.mxu0 0.0
        %401 = vmatpush1.msra.mxu0 0.0
        %402 = vmatprep.subr.mxu0 0.0
        %403 = vmatpush1.msra.mxu0 0.0
        %404 = vmatprep.subr.mxu0 0.0
        %405 = vmatpush1.msra.mxu0 0.0
        %406 = vmatprep.subr.mxu0 0.0
        %407 = vmatpush1.msra.mxu0 0.0
        %408 = vmatprep.subr.mxu0 0.0
        %409 = vmatpush1.msra.mxu0 0.0
        %410 = vmatprep.subr.mxu0 0.0
        %411 = vmatpush1.msra.mxu0 0.0
        %412 = vmatprep.subr.mxu0 0.0
        %413 = vmatpush1.msra.mxu0 0.0
        %414 = vmatprep.subr.mxu0 0.0
        %415 = vmatpush1.msra.mxu0 0.0
        %416 = vmatprep.subr.mxu0 0.0
        %417 = vmatpush1.msra.mxu0 0.0
        %418 = vmatprep.subr.mxu0 0.0
        %419 = vmatpush1.msra.mxu0 0.0
        %420 = vmatprep.subr.mxu0 0.0
        %421 = vmatpush1.msra.mxu0 0.0
        %422 = vmatprep.mubr.f32.mxu0 0.0
        %423 = vmatmul.mubr.f32.gmra.mrb[0].mxu0 %v356
        %v424 = vpop.f32.mrb[0].mxu0
        %v425 = vadd.f32 %v274, %v424
        %v426 = vpop.f32.mrb[0].mxu0
        %427 = vdwg.mxu0
        %s428 = scalar_lea.vmem %s235, 4 [#allocation2]
        %v429 = vld [vmem:[%s428] sm:$0xf]
        %v431 = vsel %vm281, %v429, 0
        %433 = vmatprep.subr.mxu0 0.0
        %434 = vmatpush1.msra.mxu0 %v431
        %435 = vmatprep.subr.mxu0 0.0
        %436 = vmatpush1.msra.mxu0 0.0
        %437 = vmatprep.subr.mxu0 0.0
        %438 = vmatpush1.msra.mxu0 0.0
        %439 = vmatprep.subr.mxu0 0.0
        %440 = vmatpush1.msra.mxu0 0.0
        %441 = vmatprep.subr.mxu0 0.0
        %442 = vmatpush1.msra.mxu0 0.0
        %443 = vmatprep.subr.mxu0 0.0
        %444 = vmatpush1.msra.mxu0 0.0
        %445 = vmatprep.subr.mxu0 0.0
        %446 = vmatpush1.msra.mxu0 0.0
        %447 = vmatprep.subr.mxu0 0.0
        %448 = vmatpush1.msra.mxu0 0.0
        %449 = vmatprep.subr.mxu0 0.0
        %450 = vmatpush1.msra.mxu0 0.0
        %451 = vmatprep.subr.mxu0 0.0
        %452 = vmatpush1.msra.mxu0 0.0
        %453 = vmatprep.subr.mxu0 0.0
        %454 = vmatpush1.msra.mxu0 0.0
        %455 = vmatprep.subr.mxu0 0.0
        %456 = vmatpush1.msra.mxu0 0.0
        %457 = vmatprep.subr.mxu0 0.0
        %458 = vmatpush1.msra.mxu0 0.0
        %459 = vmatprep.subr.mxu0 0.0
        %460 = vmatpush1.msra.mxu0 0.0
        %461 = vmatprep.subr.mxu0 0.0
        %462 = vmatpush1.msra.mxu0 0.0
        %463 = vmatprep.subr.mxu0 0.0
        %464 = vmatpush1.msra.mxu0 0.0
        %465 = vmatprep.subr.mxu0 0.0
        %466 = vmatpush1.msra.mxu0 0.0
        %467 = vmatprep.subr.mxu0 0.0
        %468 = vmatpush1.msra.mxu0 0.0
        %469 = vmatprep.subr.mxu0 0.0
        %470 = vmatpush1.msra.mxu0 0.0
        %471 = vmatprep.subr.mxu0 0.0
        %472 = vmatpush1.msra.mxu0 0.0
        %473 = vmatprep.subr.mxu0 0.0
        %474 = vmatpush1.msra.mxu0 0.0
        %475 = vmatprep.subr.mxu0 0.0
        %476 = vmatpush1.msra.mxu0 0.0
        %477 = vmatprep.subr.mxu0 0.0
        %478 = vmatpush1.msra.mxu0 0.0
        %479 = vmatprep.subr.mxu0 0.0
        %480 = vmatpush1.msra.mxu0 0.0
        %481 = vmatprep.subr.mxu0 0.0
        %482 = vmatpush1.msra.mxu0 0.0
        %483 = vmatprep.subr.mxu0 0.0
        %484 = vmatpush1.msra.mxu0 0.0
        %485 = vmatprep.subr.mxu0 0.0
        %486 = vmatpush1.msra.mxu0 0.0
        %487 = vmatprep.subr.mxu0 0.0
        %488 = vmatpush1.msra.mxu0 0.0
        %489 = vmatprep.subr.mxu0 0.0
        %490 = vmatpush1.msra.mxu0 0.0
        %491 = vmatprep.subr.mxu0 0.0
        %492 = vmatpush1.msra.mxu0 0.0
        %493 = vmatprep.subr.mxu0 0.0
        %494 = vmatpush1.msra.mxu0 0.0
        %495 = vmatprep.subr.mxu0 0.0
        %496 = vmatpush1.msra.mxu0 0.0
        %497 = vmatprep.mubr.f32.mxu0 0.0
        %498 = vmatmul.mubr.f32.gmra.mrb[0].mxu0 %v279
        %v499 = vpop.f32.mrb[0].mxu0
        %v500 = vadd.f32 %v268, %v499
        %v501 = vpop.f32.mrb[0].mxu0
        %502 = vdwg.mxu0
        %503 = vmatprep.subr.mxu0 0.0
        %504 = vmatpush1.msra.mxu0 %v431
        %505 = vmatprep.subr.mxu0 0.0
        %506 = vmatpush1.msra.mxu0 0.0
        %507 = vmatprep.subr.mxu0 0.0
        %508 = vmatpush1.msra.mxu0 0.0
        %509 = vmatprep.subr.mxu0 0.0
        %510 = vmatpush1.msra.mxu0 0.0
        %511 = vmatprep.subr.mxu0 0.0
        %512 = vmatpush1.msra.mxu0 0.0
        %513 = vmatprep.subr.mxu0 0.0
        %514 = vmatpush1.msra.mxu0 0.0
        %515 = vmatprep.subr.mxu0 0.0
        %516 = vmatpush1.msra.mxu0 0.0
        %517 = vmatprep.subr.mxu0 0.0
        %518 = vmatpush1.msra.mxu0 0.0
        %519 = vmatprep.subr.mxu0 0.0
        %520 = vmatpush1.msra.mxu0 0.0
        %521 = vmatprep.subr.mxu0 0.0
        %522 = vmatpush1.msra.mxu0 0.0
        %523 = vmatprep.subr.mxu0 0.0
        %524 = vmatpush1.msra.mxu0 0.0
        %525 = vmatprep.subr.mxu0 0.0
        %526 = vmatpush1.msra.mxu0 0.0
        %527 = vmatprep.subr.mxu0 0.0
        %528 = vmatpush1.msra.mxu0 0.0
        %529 = vmatprep.subr.mxu0 0.0
        %530 = vmatpush1.msra.mxu0 0.0
        %531 = vmatprep.subr.mxu0 0.0
        %532 = vmatpush1.msra.mxu0 0.0
        %533 = vmatprep.subr.mxu0 0.0
        %534 = vmatpush1.msra.mxu0 0.0
        %535 = vmatprep.subr.mxu0 0.0
        %536 = vmatpush1.msra.mxu0 0.0
        %537 = vmatprep.subr.mxu0 0.0
        %538 = vmatpush1.msra.mxu0 0.0
        %539 = vmatprep.subr.mxu0 0.0
        %540 = vmatpush1.msra.mxu0 0.0
        %541 = vmatprep.subr.mxu0 0.0
        %542 = vmatpush1.msra.mxu0 0.0
        %543 = vmatprep.subr.mxu0 0.0
        %544 = vmatpush1.msra.mxu0 0.0
        %545 = vmatprep.subr.mxu0 0.0
        %546 = vmatpush1.msra.mxu0 0.0
        %547 = vmatprep.subr.mxu0 0.0
        %548 = vmatpush1.msra.mxu0 0.0
        %549 = vmatprep.subr.mxu0 0.0
        %550 = vmatpush1.msra.mxu0 0.0
        %551 = vmatprep.subr.mxu0 0.0
        %552 = vmatpush1.msra.mxu0 0.0
        %553 = vmatprep.subr.mxu0 0.0
        %554 = vmatpush1.msra.mxu0 0.0
        %555 = vmatprep.subr.mxu0 0.0
        %556 = vmatpush1.msra.mxu0 0.0
        %557 = vmatprep.subr.mxu0 0.0
        %558 = vmatpush1.msra.mxu0 0.0
        %559 = vmatprep.subr.mxu0 0.0
        %560 = vmatpush1.msra.mxu0 0.0
        %561 = vmatprep.subr.mxu0 0.0
        %562 = vmatpush1.msra.mxu0 0.0
        %563 = vmatprep.subr.mxu0 0.0
        %564 = vmatpush1.msra.mxu0 0.0
        %565 = vmatprep.subr.mxu0 0.0
        %566 = vmatpush1.msra.mxu0 0.0
        %567 = vmatprep.mubr.f32.mxu0 0.0
        %568 = vmatmul.mubr.f32.gmra.mrb[0].mxu0 %v356
        %v569 = vpop.f32.mrb[0].mxu0
        %v570 = vadd.f32 %v274, %v569
        %v571 = vpop.f32.mrb[0].mxu0
        %572 = vdwg.mxu0
        %v573 = vmax.f32 %v425, %v570
        %v574 = vsub.f32 %v425, %v573
        %v575 = vmul.f32 %v574, 1.442695
        %v576 = vpow.pop %v575
        %v577 = vsub.f32 %v570, %v573
        %v578 = vmul.f32 %v577, 1.442695
        %v579 = vpow.pop %v578
        %v580 = vadd.f32 %v576, %v579
        %v581 = vrcp.pop %v580
        %v582 = vmul.f32 %v576, %v581
        %v583 = vld [vmem:[%s5] sm:$0xf]
        %584 = vmatprep.subr.mxu0 0.0
        %585 = vmatpush1.xpose.msra.mxu0 %v582
        %586 = vmatprep.subr.mxu0 0.0
        %587 = vmatpush1.xpose.msra.mxu0 0.0
        %588 = vmatprep.subr.mxu0 0.0
        %589 = vmatpush1.xpose.msra.mxu0 0.0
        %590 = vmatprep.subr.mxu0 0.0
        %591 = vmatpush1.xpose.msra.mxu0 0.0
        %592 = vmatprep.subr.mxu0 0.0
        %593 = vmatpush1.xpose.msra.mxu0 0.0
        %594 = vmatprep.subr.mxu0 0.0
        %595 = vmatpush1.xpose.msra.mxu0 0.0
        %596 = vmatprep.subr.mxu0 0.0
        %597 = vmatpush1.xpose.msra.mxu0 0.0
        %598 = vmatprep.subr.mxu0 0.0
        %599 = vmatpush1.xpose.msra.mxu0 0.0
        %600 = vmatprep.subr.mxu0 0.0
        %601 = vmatpush1.xpose.msra.mxu0 0.0
        %602 = vmatprep.subr.mxu0 0.0
        %603 = vmatpush1.xpose.msra.mxu0 0.0
        %604 = vmatprep.subr.mxu0 0.0
        %605 = vmatpush1.xpose.msra.mxu0 0.0
        %606 = vmatprep.subr.mxu0 0.0
        %607 = vmatpush1.xpose.msra.mxu0 0.0
        %608 = vmatprep.subr.mxu0 0.0
        %609 = vmatpush1.xpose.msra.mxu0 0.0
        %610 = vmatprep.subr.mxu0 0.0
        %611 = vmatpush1.xpose.msra.mxu0 0.0
        %612 = vmatprep.subr.mxu0 0.0
        %613 = vmatpush1.xpose.msra.mxu0 0.0
        %614 = vmatprep.subr.mxu0 0.0
        %615 = vmatpush1.xpose.msra.mxu0 0.0
        %616 = vmatprep.subr.mxu0 0.0
        %617 = vmatpush1.xpose.msra.mxu0 0.0
        %618 = vmatprep.subr.mxu0 0.0
        %619 = vmatpush1.xpose.msra.mxu0 0.0
        %620 = vmatprep.subr.mxu0 0.0
        %621 = vmatpush1.xpose.msra.mxu0 0.0
        %622 = vmatprep.subr.mxu0 0.0
        %623 = vmatpush1.xpose.msra.mxu0 0.0
        %624 = vmatprep.subr.mxu0 0.0
        %625 = vmatpush1.xpose.msra.mxu0 0.0
        %626 = vmatprep.subr.mxu0 0.0
        %627 = vmatpush1.xpose.msra.mxu0 0.0
        %628 = vmatprep.subr.mxu0 0.0
        %629 = vmatpush1.xpose.msra.mxu0 0.0
        %630 = vmatprep.subr.mxu0 0.0
        %631 = vmatpush1.xpose.msra.mxu0 0.0
        %632 = vmatprep.subr.mxu0 0.0
        %633 = vmatpush1.xpose.msra.mxu0 0.0
        %634 = vmatprep.subr.mxu0 0.0
        %635 = vmatpush1.xpose.msra.mxu0 0.0
        %636 = vmatprep.subr.mxu0 0.0
        %637 = vmatpush1.xpose.msra.mxu0 0.0
        %638 = vmatprep.subr.mxu0 0.0
        %639 = vmatpush1.xpose.msra.mxu0 0.0
        %640 = vmatprep.subr.mxu0 0.0
        %641 = vmatpush1.xpose.msra.mxu0 0.0
        %642 = vmatprep.subr.mxu0 0.0
        %643 = vmatpush1.xpose.msra.mxu0 0.0
        %644 = vmatprep.subr.mxu0 0.0
        %645 = vmatpush1.xpose.msra.mxu0 0.0
        %646 = vmatprep.subr.mxu0 0.0
        %647 = vmatpush1.xpose.msra.mxu0 0.0
        %648 = vmatprep.mubr.f32.mxu0 0.0
        %649 = vmatmul.mubr.f32.gmra.mrb[0].mxu0 %v352
        %v650 = vpop.f32.mrb[0].mxu0
        %v651 = vadd.f32 0.0, %v650
        %v652 = vpop.f32.mrb[0].mxu0
        %653 = vdwg.mxu0
        %v654 = vadd.f32 %v583, %v651
        %vm655 = vcmask 27648
        %656 = vst.msk [vmem:[%s5] sm:$0xf] %vm655, %v654
        %v657 = vmul.f32 %v579, %v581
        %s658 = scalar_lea.vmem %s5, 4
        %v659 = vld [vmem:[%s658] sm:$0xf]
        %660 = vmatprep.subr.mxu0 0.0
        %661 = vmatpush1.xpose.msra.mxu0 %v657
        %662 = vmatprep.subr.mxu0 0.0
        %663 = vmatpush1.xpose.msra.mxu0 0.0
        %664 = vmatprep.subr.mxu0 0.0
        %665 = vmatpush1.xpose.msra.mxu0 0.0
        %666 = vmatprep.subr.mxu0 0.0
        %667 = vmatpush1.xpose.msra.mxu0 0.0
        %668 = vmatprep.subr.mxu0 0.0
        %669 = vmatpush1.xpose.msra.mxu0 0.0
        %670 = vmatprep.subr.mxu0 0.0
        %671 = vmatpush1.xpose.msra.mxu0 0.0
        %672 = vmatprep.subr.mxu0 0.0
        %673 = vmatpush1.xpose.msra.mxu0 0.0
        %674 = vmatprep.subr.mxu0 0.0
        %675 = vmatpush1.xpose.msra.mxu0 0.0
        %676 = vmatprep.subr.mxu0 0.0
        %677 = vmatpush1.xpose.msra.mxu0 0.0
        %678 = vmatprep.subr.mxu0 0.0
        %679 = vmatpush1.xpose.msra.mxu0 0.0
        %680 = vmatprep.subr.mxu0 0.0
        %681 = vmatpush1.xpose.msra.mxu0 0.0
        %682 = vmatprep.subr.mxu0 0.0
        %683 = vmatpush1.xpose.msra.mxu0 0.0
        %684 = vmatprep.subr.mxu0 0.0
        %685 = vmatpush1.xpose.msra.mxu0 0.0
        %686 = vmatprep.subr.mxu0 0.0
        %687 = vmatpush1.xpose.msra.mxu0 0.0
        %688 = vmatprep.subr.mxu0 0.0
        %689 = vmatpush1.xpose.msra.mxu0 0.0
        %690 = vmatprep.subr.mxu0 0.0
        %691 = vmatpush1.xpose.msra.mxu0 0.0
        %692 = vmatprep.subr.mxu0 0.0
        %693 = vmatpush1.xpose.msra.mxu0 0.0
        %694 = vmatprep.subr.mxu0 0.0
        %695 = vmatpush1.xpose.msra.mxu0 0.0
        %696 = vmatprep.subr.mxu0 0.0
        %697 = vmatpush1.xpose.msra.mxu0 0.0
        %698 = vmatprep.subr.mxu0 0.0
        %699 = vmatpush1.xpose.msra.mxu0 0.0
        %700 = vmatprep.subr.mxu0 0.0
        %701 = vmatpush1.xpose.msra.mxu0 0.0
        %702 = vmatprep.subr.mxu0 0.0
        %703 = vmatpush1.xpose.msra.mxu0 0.0
        %704 = vmatprep.subr.mxu0 0.0
        %705 = vmatpush1.xpose.msra.mxu0 0.0
        %706 = vmatprep.subr.mxu0 0.0
        %707 = vmatpush1.xpose.msra.mxu0 0.0
        %708 = vmatprep.subr.mxu0 0.0
        %709 = vmatpush1.xpose.msra.mxu0 0.0
        %710 = vmatprep.subr.mxu0 0.0
        %711 = vmatpush1.xpose.msra.mxu0 0.0
        %712 = vmatprep.subr.mxu0 0.0
        %713 = vmatpush1.xpose.msra.mxu0 0.0
        %714 = vmatprep.subr.mxu0 0.0
        %715 = vmatpush1.xpose.msra.mxu0 0.0
        %716 = vmatprep.subr.mxu0 0.0
        %717 = vmatpush1.xpose.msra.mxu0 0.0
        %718 = vmatprep.subr.mxu0 0.0
        %719 = vmatpush1.xpose.msra.mxu0 0.0
        %720 = vmatprep.subr.mxu0 0.0
        %721 = vmatpush1.xpose.msra.mxu0 0.0
        %722 = vmatprep.subr.mxu0 0.0
        %723 = vmatpush1.xpose.msra.mxu0 0.0
        %724 = vmatprep.mubr.f32.mxu0 0.0
        %725 = vmatmul.mubr.f32.gmra.mrb[0].mxu0 %v500
        %v726 = vpop.f32.mrb[0].mxu0
        %v727 = vadd.f32 0.0, %v726
        %v728 = vpop.f32.mrb[0].mxu0
        %729 = vdwg.mxu0
        %v730 = vadd.f32 %v659, %v727
        %731 = vst.msk [vmem:[%s658] sm:$0xf] %vm655, %v730
        // Predicated region
        $region86: #{a2network_forward.2} parent=76 // pred_check
          %p732 = pneg %p139
        $region87: #{a2network_forward.2} parent=76 // pred_check_branch
          %734 = sbr.rel (%p732) target = $region89
        $region88: #{a2network_forward.2} parent=76 // pred_region
          _
        $region89: #{a2network_forward.2} parent=76 // pred_fallthru
          _
        // Predicated region
        $region90: #{a2network_forward.2} parent=76 // pred_check
          %p735 = pneg %p139
        $region91: #{a2network_forward.2} parent=76 // pred_check_branch
          %737 = sbr.rel (%p735) target = $region93
        $region92: #{a2network_forward.2} parent=76 // pred_region
          _
        $region93: #{a2network_forward.2} parent=76 // pred_fallthru
          _
      $region77: #{a2network_forward.2} parent=5 // pred_fallthru
        _
      %p738 = scmp.le.s32.totalorder 2, %s11
      // Predicated region
      $region94: #{a2network_forward.2} parent=5 // pred_check
        %p739 = pneg %p738
      $region95: #{a2network_forward.2} parent=5 // pred_check_branch
        %741 = sbr.rel (%p739) target = $region97
      $region96: #{a2network_forward.2} parent=5 // pred_region
        %s742 = ssub.s32 %s11, 2
      $region97: #{a2network_forward.2} parent=5 // pred_fallthru
        _
    $region6: #{a2network_forward.2} parent=1 // loop_footer
      %s15 = sadd.s32 1, %s11
    $region7: #{a2network_forward.2} parent=1 // loop_footer_branch
      %10 = sbr.rel target = $region3
    $region8: #{a2network_forward.2} parent=1 // loop_exit
      _

// kernel: a2network_forward.3
$region0: #{a2network_forward.3}
  #allocation0 [shape = 'u32[]', space=smem, size = 0x4, offset = 0x4, fixed_abs, tag = 'smem constant byte address 0x4 - core index']
  #allocation1 [shape = 'u32[144,128]{1,0:T(1,128)}', space=vmem, size = 0x12000, scoped, tag = 'internal scratch']
  %s0 = inlined_call_operand.vmem [shape: f32[2,4,256], index: 0, kind: input, shape index: {}]
  %s1 = inlined_call_operand.vmem [shape: f32[2,4,4], index: 1, kind: input, shape index: {}]
  %s2 = inlined_call_operand.vmem [shape: f32[4,4], index: 2, kind: input, shape index: {}]
  %s3 = inlined_call_operand.vmem [shape: f32[4,1], index: 3, kind: input, shape index: {}]
  %s4 = inlined_call_operand.vmem [shape: f32[4,4], index: 4, kind: input, shape index: {}]
  %s5 = inlined_call_operand.vmem [shape: f32[4,1], index: 5, kind: input, shape index: {}]
  %s6 = inlined_call_operand.vmem [shape: f32[2,4,256], index: 6, kind: output, shape index: {}]
  %s7 = sld [smem:[#allocation0]]
  $region135: #{a2network_forward.3} parent=0
    _
  %s9 = ssub.s32 1, %s7
  %s10 = scalar_select 0, %s9, %s7
  $region1: #{a2network_forward.3} parent=0
    #allocation2 [shape = 'u8[8192]{0}', space=vmem, size = 0x2000, scoped, tag = 'input window, operand 0']
    #allocation3 [shape = 'u8[8192]{0}', space=vmem, size = 0x2000, scoped, tag = 'output window, operand 0']
    loop: start=0, step=1, limit=4
    $region2: #{a2network_forward.3} parent=1 // loop_pre_header
      _
    $region3: #{a2network_forward.3} parent=1 // loop_header
      %s12 = sphi 0, %s16
      %p13 = scmp.ge.s32.totalorder %s12, 4
      %s22 = sphi 0, %s24
      %s25 = sphi 0, %s22
      %s26 = sphi 0, %s25
      %s42 = sphi 0, %s26
      %s46 = sphi 0, %s46
      %s48 = sphi 0, %s46
      %s49 = sphi 0, %s48
      %s63 = sphi 0, %s49
      %s67 = sphi 0, %s67
      %s69 = sphi 0, %s67
      %s70 = sphi 0, %s69
      %s84 = sphi 0, %s70
      %s88 = sphi 0, %s88
      %s90 = sphi 0, %s88
      %s91 = sphi 0, %s90
      %s105 = sphi 0, %s91
      %s109 = sphi 0, %s109
      %s111 = sphi 0, %s109
      %s112 = sphi 0, %s111
      %s126 = sphi 0, %s112
      %s130 = sphi 0, %s130
      %s132 = sphi 0, %s130
      %s133 = sphi 0, %s132
      %s147 = sphi 0, %s133
      %s153 = sphi 0, %s155
      %s156 = sphi 0, %s153
      %s157 = sphi 0, %s156
      %s173 = sphi 0, %s157
    $region4: #{a2network_forward.3} parent=1 // loop_header_branch
      %15 = sbr.rel (%p13) target = $region8
    $region5: #{a2network_forward.3} parent=1 // loop_body
      %s17 = ssub.s32 %s12, 1
      %s18 = ssub.s32 %s12, 2
      %s19 = sadd.s32 %s12, 1
      %s20 = ssub.s32 %s12, %s19
      %p21 = scmp.eq.s32.totalorder %s20, 0
      %s23 = sadd.s32 %s22, 1
      %s24 = scalar_select %p21, %s22, %s23
      %p27 = pneg %p21
      %p28 = scmp.eq.s32.totalorder %s12, 1
      %p29 = por %p27, %p28
      %p30 = scmp.ne.s32.totalorder %s22, %s25
      %p31 = scmp.eq.s32.totalorder %s12, 0
      %p32 = por %p30, %p31
      %p33 = scmp.ne.s32.totalorder %s22, %s25
      %p34 = scmp.eq.s32.totalorder %s17, 1
      %p35 = por %p33, %p34
      %p36 = scmp.ne.s32.totalorder %s25, %s26
      %p37 = scmp.eq.s32.totalorder %s17, 0
      %p38 = por %p36, %p37
      %p39 = scmp.ne.s32.totalorder %s25, %s26
      %p40 = scmp.eq.s32.totalorder %s18, 1
      %p41 = por %p39, %p40
      %p43 = scmp.ne.s32.totalorder %s26, %s42
      %p44 = scmp.eq.s32.totalorder %s18, 0
      %p45 = por %p43, %p44
      %s47 = sadd.s32 %s46, 1
      %p50 = scmp.eq.s32.totalorder %s12, 1
      %p51 = scmp.ne.s32.totalorder %s46, %s48
      %p52 = scmp.eq.s32.totalorder %s12, 0
      %p53 = por %p51, %p52
      %p54 = scmp.ne.s32.totalorder %s46, %s48
      %p55 = scmp.eq.s32.totalorder %s17, 1
      %p56 = por %p54, %p55
      %p57 = scmp.ne.s32.totalorder %s48, %s49
      %p58 = scmp.eq.s32.totalorder %s17, 0
      %p59 = por %p57, %p58
      %p60 = scmp.ne.s32.totalorder %s48, %s49
      %p61 = scmp.eq.s32.totalorder %s18, 1
      %p62 = por %p60, %p61
      %p64 = scmp.ne.s32.totalorder %s49, %s63
      %p65 = scmp.eq.s32.totalorder %s18, 0
      %p66 = por %p64, %p65
      %s68 = sadd.s32 %s67, 1
      %p71 = scmp.eq.s32.totalorder %s12, 1
      %p72 = scmp.ne.s32.totalorder %s67, %s69
      %p73 = scmp.eq.s32.totalorder %s12, 0
      %p74 = por %p72, %p73
      %p75 = scmp.ne.s32.totalorder %s67, %s69
      %p76 = scmp.eq.s32.totalorder %s17, 1
      %p77 = por %p75, %p76
      %p78 = scmp.ne.s32.totalorder %s69, %s70
      %p79 = scmp.eq.s32.totalorder %s17, 0
      %p80 = por %p78, %p79
      %p81 = scmp.ne.s32.totalorder %s69, %s70
      %p82 = scmp.eq.s32.totalorder %s18, 1
      %p83 = por %p81, %p82
      %p85 = scmp.ne.s32.totalorder %s70, %s84
      %p86 = scmp.eq.s32.totalorder %s18, 0
      %p87 = por %p85, %p86
      %s89 = sadd.s32 %s88, 1
      %p92 = scmp.eq.s32.totalorder %s12, 1
      %p93 = scmp.ne.s32.totalorder %s88, %s90
      %p94 = scmp.eq.s32.totalorder %s12, 0
      %p95 = por %p93, %p94
      %p96 = scmp.ne.s32.totalorder %s88, %s90
      %p97 = scmp.eq.s32.totalorder %s17, 1
      %p98 = por %p96, %p97
      %p99 = scmp.ne.s32.totalorder %s90, %s91
      %p100 = scmp.eq.s32.totalorder %s17, 0
      %p101 = por %p99, %p100
      %p102 = scmp.ne.s32.totalorder %s90, %s91
      %p103 = scmp.eq.s32.totalorder %s18, 1
      %p104 = por %p102, %p103
      %p106 = scmp.ne.s32.totalorder %s91, %s105
      %p107 = scmp.eq.s32.totalorder %s18, 0
      %p108 = por %p106, %p107
      %s110 = sadd.s32 %s109, 1
      %p113 = scmp.eq.s32.totalorder %s12, 1
      %p114 = scmp.ne.s32.totalorder %s109, %s111
      %p115 = scmp.eq.s32.totalorder %s12, 0
      %p116 = por %p114, %p115
      %p117 = scmp.ne.s32.totalorder %s109, %s111
      %p118 = scmp.eq.s32.totalorder %s17, 1
      %p119 = por %p117, %p118
      %p120 = scmp.ne.s32.totalorder %s111, %s112
      %p121 = scmp.eq.s32.totalorder %s17, 0
      %p122 = por %p120, %p121
      %p123 = scmp.ne.s32.totalorder %s111, %s112
      %p124 = scmp.eq.s32.totalorder %s18, 1
      %p125 = por %p123, %p124
      %p127 = scmp.ne.s32.totalorder %s112, %s126
      %p128 = scmp.eq.s32.totalorder %s18, 0
      %p129 = por %p127, %p128
      %s131 = sadd.s32 %s130, 1
      %p134 = scmp.eq.s32.totalorder %s12, 1
      %p135 = scmp.ne.s32.totalorder %s130, %s132
      %p136 = scmp.eq.s32.totalorder %s12, 0
      %p137 = por %p135, %p136
      %p138 = scmp.ne.s32.totalorder %s130, %s132
      %p139 = scmp.eq.s32.totalorder %s17, 1
      %p140 = por %p138, %p139
      %p141 = scmp.ne.s32.totalorder %s132, %s133
      %p142 = scmp.eq.s32.totalorder %s17, 0
      %p143 = por %p141, %p142
      %p144 = scmp.ne.s32.totalorder %s132, %s133
      %p145 = scmp.eq.s32.totalorder %s18, 1
      %p146 = por %p144, %p145
      %p148 = scmp.ne.s32.totalorder %s133, %s147
      %p149 = scmp.eq.s32.totalorder %s18, 0
      %p150 = por %p148, %p149
      %s151 = ssub.s32 %s12, %s19
      %p152 = scmp.eq.s32.totalorder %s151, 0
      %s154 = sadd.s32 %s153, 1
      %s155 = scalar_select %p152, %s153, %s154
      %p158 = pneg %p152
      %p159 = scmp.eq.s32.totalorder %s12, 1
      %p160 = por %p158, %p159
      %p161 = scmp.ne.s32.totalorder %s153, %s156
      %p162 = scmp.eq.s32.totalorder %s12, 0
      %p163 = por %p161, %p162
      %p164 = scmp.ne.s32.totalorder %s153, %s156
      %p165 = scmp.eq.s32.totalorder %s17, 1
      %p166 = por %p164, %p165
      %p167 = scmp.ne.s32.totalorder %s156, %s157
      %p168 = scmp.eq.s32.totalorder %s17, 0
      %p169 = por %p167, %p168
      %p170 = scmp.ne.s32.totalorder %s156, %s157
      %p171 = scmp.eq.s32.totalorder %s18, 1
      %p172 = por %p170, %p171
      %p174 = scmp.ne.s32.totalorder %s157, %s173
      %p175 = scmp.eq.s32.totalorder %s18, 0
      %p176 = por %p174, %p175
      %p177 = scmp.le.s32.totalorder 1, %s12
      %p178 = scmp.lt.s32.totalorder %s12, 3
      %p179 = pnand %p177, %p178
      %p180 = pneg %p179
      // Predicated region
      $region9: #{a2network_forward.3} parent=5 // pred_check
        _
      $region10: #{a2network_forward.3} parent=5 // pred_check_branch
        %182 = sbr.rel (%p179) target = $region12
      $region11: #{a2network_forward.3} parent=5 // pred_region
        %s183 = ssub.s32 %s12, 1
        // Predicated region
        $region13: #{a2network_forward.3} parent=11 // pred_check
          %p184 = pneg %p59
        $region14: #{a2network_forward.3} parent=11 // pred_check_branch
          %186 = sbr.rel (%p184) target = $region16
        $region15: #{a2network_forward.3} parent=11 // pred_region
          _
        $region16: #{a2network_forward.3} parent=11 // pred_fallthru
          _
        // Predicated region
        $region17: #{a2network_forward.3} parent=11 // pred_check
          %p187 = pneg %p80
        $region18: #{a2network_forward.3} parent=11 // pred_check_branch
          %189 = sbr.rel (%p187) target = $region20
        $region19: #{a2network_forward.3} parent=11 // pred_region
          _
        $region20: #{a2network_forward.3} parent=11 // pred_fallthru
          _
        // Predicated region
        $region21: #{a2network_forward.3} parent=11 // pred_check
          %p190 = pneg %p101
        $region22: #{a2network_forward.3} parent=11 // pred_check_branch
          %192 = sbr.rel (%p190) target = $region24
        $region23: #{a2network_forward.3} parent=11 // pred_region
          _
        $region24: #{a2network_forward.3} parent=11 // pred_fallthru
          _
        // Predicated region
        $region25: #{a2network_forward.3} parent=11 // pred_check
          %p193 = pneg %p122
        $region26: #{a2network_forward.3} parent=11 // pred_check_branch
          %195 = sbr.rel (%p193) target = $region28
        $region27: #{a2network_forward.3} parent=11 // pred_region
          _
        $region28: #{a2network_forward.3} parent=11 // pred_fallthru
          _
        // Predicated region
        $region29: #{a2network_forward.3} parent=11 // pred_check
          %p196 = pneg %p143
        $region30: #{a2network_forward.3} parent=11 // pred_check_branch
          %198 = sbr.rel (%p196) target = $region32
        $region31: #{a2network_forward.3} parent=11 // pred_region
          _
        $region32: #{a2network_forward.3} parent=11 // pred_fallthru
          _
      $region12: #{a2network_forward.3} parent=5 // pred_fallthru
        _
      %p199 = scmp.lt.s32.totalorder %s12, 2
      // Predicated region
      $region33: #{a2network_forward.3} parent=5 // pred_check
        %p200 = pneg %p199
      $region34: #{a2network_forward.3} parent=5 // pred_check_branch
        %202 = sbr.rel (%p200) target = $region36
      $region35: #{a2network_forward.3} parent=5 // pred_region
        // Predicated region
        $region37: #{a2network_forward.3} parent=35 // pred_check
          %p203 = pneg %p32
        $region38: #{a2network_forward.3} parent=35 // pred_check_branch
          %205 = sbr.rel (%p203) target = $region40
        $region39: #{a2network_forward.3} parent=35 // pred_region
          %s206 = sand.u32 %s22, 1
          %s207 = sand.u32 %s22, 1
          %s208 = smul.addr %s207, 8
          %s209 = scalar_lea.vmem [#allocation2], %s208
          %s210 = smul.addr %s12, 4
          %s211 = scalar_lea.vmem %s0, %s210
          // Predicated region
          $region41: #{a2network_forward.3} parent=39 // pred_check
            _
          $region42: #{a2network_forward.3} parent=39 // pred_check_branch
            %213 = sbr.rel (0) target = $region44
          $region43: #{a2network_forward.3} parent=39 // pred_region
            // Predicated region
            $region45: #{a2network_forward.3} parent=43 // pred_check
              _
            $region46: #{a2network_forward.3} parent=43 // pred_check_branch
              %215 = sbr.rel target = $region48
            $region47: #{a2network_forward.3} parent=43 // pred_region
              // Predicated region
              $region60: #{a2network_forward.3} parent=47 // pred_check
                _
              $region61: #{a2network_forward.3} parent=47 // pred_check_branch
                %232 = sbr.rel (0) target = $region63
              $region62: #{a2network_forward.3} parent=47 // pred_region
                loop: start=0, step=1, limit=1
                $region64: #{a2network_forward.3} parent=62 // loop_pre_header
                  _
                $region65: #{a2network_forward.3} parent=62 // loop_header
                  %s234 = sphi 0, %s238
                  %p235 = scmp.ge.s32.totalorder %s234, 1
                  %s239 = sphi %s211, %s211
                  %s240 = sphi %s209, %s209
                $region66: #{a2network_forward.3} parent=62 // loop_header_branch
                  %237 = sbr.rel (%p235) target = $region70
                $region67: #{a2network_forward.3} parent=62 // loop_body
                  _
                $region68: #{a2network_forward.3} parent=62 // loop_footer
                  %s238 = sadd.s32 1, %s234
                $region69: #{a2network_forward.3} parent=62 // loop_footer_branch
                  %233 = sbr.rel target = $region65
                $region70: #{a2network_forward.3} parent=62 // loop_exit
                  _
                loop: start=0, step=1, limit=1
                $region71: #{a2network_forward.3} parent=62 // loop_pre_header
                  _
                $region72: #{a2network_forward.3} parent=62 // loop_header
                  %s243 = sphi 0, %s247
                  %p244 = scmp.ge.s32.totalorder %s243, 1
                  %s248 = sphi %s211, %s211
                  %s249 = sphi %s209, %s209
                $region73: #{a2network_forward.3} parent=62 // loop_header_branch
                  %246 = sbr.rel (%p244) target = $region77
                $region74: #{a2network_forward.3} parent=62 // loop_body
                  %v250 = vld [vmem:[%s248] sm:$0xf]
                  %251 = vst [vmem:[%s249] sm:$0xf] %v250
                  %v252 = vld [vmem:[%s248 + $0x8] sm:$0xf]
                  %253 = vst [vmem:[%s249 + $0x4] sm:$0xf] %v252
                $region75: #{a2network_forward.3} parent=62 // loop_footer
                  %s247 = sadd.s32 1, %s243
                $region76: #{a2network_forward.3} parent=62 // loop_footer_branch
                  %242 = sbr.rel target = $region72
                $region77: #{a2network_forward.3} parent=62 // loop_exit
                  _
              $region63: #{a2network_forward.3} parent=47 // pred_fallthru
                _
            $region48: #{a2network_forward.3} parent=43 // pred_fallthru
              _
            // Predicated region
            $region49: #{a2network_forward.3} parent=43 // pred_check
              _
            $region50: #{a2network_forward.3} parent=43 // pred_check_branch
              %217 = sbr.rel (0) target = $region52
            $region51: #{a2network_forward.3} parent=43 // pred_region
              loop: start=0, step=1, limit=1
              $region53: #{a2network_forward.3} parent=51 // loop_pre_header
                _
              $region54: #{a2network_forward.3} parent=51 // loop_header
                %s220 = sphi 0, %s224
                %p221 = scmp.ge.s32.totalorder %s220, 1
                %s225 = sphi %s211, %s211
                %s226 = sphi %s209, %s209
              $region55: #{a2network_forward.3} parent=51 // loop_header_branch
                %223 = sbr.rel (%p221) target = $region59
              $region56: #{a2network_forward.3} parent=51 // loop_body
                %v227 = vld [vmem:[%s225] sm:$0xf]
                %228 = vst [vmem:[%s226] sm:$0xf] %v227
                %v229 = vld [vmem:[%s225 + $0x8] sm:$0xf]
                %230 = vst [vmem:[%s226 + $0x4] sm:$0xf] %v229
              $region57: #{a2network_forward.3} parent=51 // loop_footer
                %s224 = sadd.s32 1, %s220
              $region58: #{a2network_forward.3} parent=51 // loop_footer_branch
                %219 = sbr.rel target = $region54
              $region59: #{a2network_forward.3} parent=51 // loop_exit
                _
            $region52: #{a2network_forward.3} parent=43 // pred_fallthru
              _
          $region44: #{a2network_forward.3} parent=39 // pred_fallthru
            _
          %254 = vnop
        $region40: #{a2network_forward.3} parent=35 // pred_fallthru
          _
      $region36: #{a2network_forward.3} parent=5 // pred_fallthru
        _
      %p255 = scmp.le.s32.totalorder 1, %s12
      %p256 = scmp.lt.s32.totalorder %s12, 3
      %p257 = pnand %p255, %p256
      %p258 = pneg %p257
      // Predicated region
      $region78: #{a2network_forward.3} parent=5 // pred_check
        _
      $region79: #{a2network_forward.3} parent=5 // pred_check_branch
        %260 = sbr.rel (%p257) target = $region81
      $region80: #{a2network_forward.3} parent=5 // pred_region
        %s261 = ssub.s32 %s12, 1
        %s262 = sand.u32 %s25, 1
        %s263 = sand.u32 %s25, 1
        %s264 = smul.addr %s263, 8
        %s265 = scalar_lea.vmem [#allocation2], %s264
        // Predicated region
        $region82: #{a2network_forward.3} parent=80 // pred_check
          %p266 = pneg %p38
        $region83: #{a2network_forward.3} parent=80 // pred_check_branch
          %268 = sbr.rel (%p266) target = $region85
        $region84: #{a2network_forward.3} parent=80 // pred_region
          _
        $region85: #{a2network_forward.3} parent=80 // pred_fallthru
          _
        %s269 = sand.u32 %s25, 1
        %s270 = sand.u32 %s25, 1
        %s271 = smul.addr %s270, 8
        %s272 = scalar_lea.vmem [#allocation2], %s271
        %p273 = pneg %p38
        %p274 = pneg %p35
        %p275 = pneg %p59
        %p276 = pneg %p56
        %p277 = pneg %p80
        %p278 = pneg %p77
        %p279 = pneg %p101
        %p280 = pneg %p98
        %p281 = pneg %p122
        %p282 = pneg %p119
        %p283 = pneg %p143
        %p284 = pneg %p140
        %p285 = pneg %p169
        %p286 = pneg %p166
        %s287 = sand.u32 %s156, 1
        %s288 = sand.u32 %s156, 1
        %s289 = smul.addr %s288, 8
        %s290 = scalar_lea.vmem [#allocation3], %s289
        %v291 = vld [vmem:[%s2] sm:$0xf]
        %v292 = vld [vmem:[%s4] sm:$0xf]
        %v293 = vld [vmem:[%s3] sm:$0xf]
        %295 = vset.pattern.permute.xlu0 0
        %296 = vperm.xlu0 %295, %v293
        %v297 = vpop.permute.xlu0 %296
        %v299 = vld [vmem:[%s5] sm:$0xf]
        %301 = vset.pattern.permute.xlu0 0
        %302 = vperm.xlu0 %301, %v299
        %v303 = vpop.permute.xlu0 %302
        %v305 = vld [vmem:[%s265] sm:$0xf]
        %vm306 = vcmask 31744
        %v308 = vsel %vm306, %v291, 0
        %vm310 = vcmask 1043456
        %v312 = vsel %vm310, %v305, 0
        %314 = vmatprep.subr.mxu0 0.0
        %315 = vmatpush1.msra.mxu0 %v312
        %316 = vmatprep.subr.mxu0 0.0
        %317 = vmatpush1.msra.mxu0 0.0
        %318 = vmatprep.subr.mxu0 0.0
        %319 = vmatpush1.msra.mxu0 0.0
        %320 = vmatprep.subr.mxu0 0.0
        %321 = vmatpush1.msra.mxu0 0.0
        %322 = vmatprep.subr.mxu0 0.0
        %323 = vmatpush1.msra.mxu0 0.0
        %324 = vmatprep.subr.mxu0 0.0
        %325 = vmatpush1.msra.mxu0 0.0
        %326 = vmatprep.subr.mxu0 0.0
        %327 = vmatpush1.msra.mxu0 0.0
        %328 = vmatprep.subr.mxu0 0.0
        %329 = vmatpush1.msra.mxu0 0.0
        %330 = vmatprep.subr.mxu0 0.0
        %331 = vmatpush1.msra.mxu0 0.0
        %332 = vmatprep.subr.mxu0 0.0
        %333 = vmatpush1.msra.mxu0 0.0
        %334 = vmatprep.subr.mxu0 0.0
        %335 = vmatpush1.msra.mxu0 0.0
        %336 = vmatprep.subr.mxu0 0.0
        %337 = vmatpush1.msra.mxu0 0.0
        %338 = vmatprep.subr.mxu0 0.0
        %339 = vmatpush1.msra.mxu0 0.0
        %340 = vmatprep.subr.mxu0 0.0
        %341 = vmatpush1.msra.mxu0 0.0
        %342 = vmatprep.subr.mxu0 0.0
        %343 = vmatpush1.msra.mxu0 0.0
        %344 = vmatprep.subr.mxu0 0.0
        %345 = vmatpush1.msra.mxu0 0.0
        %346 = vmatprep.subr.mxu0 0.0
        %347 = vmatpush1.msra.mxu0 0.0
        %348 = vmatprep.subr.mxu0 0.0
        %349 = vmatpush1.msra.mxu0 0.0
        %350 = vmatprep.subr.mxu0 0.0
        %351 = vmatpush1.msra.mxu0 0.0
        %352 = vmatprep.subr.mxu0 0.0
        %353 = vmatpush1.msra.mxu0 0.0
        %354 = vmatprep.subr.mxu0 0.0
        %355 = vmatpush1.msra.mxu0 0.0
        %356 = vmatprep.subr.mxu0 0.0
        %357 = vmatpush1.msra.mxu0 0.0
        %358 = vmatprep.subr.mxu0 0.0
        %359 = vmatpush1.msra.mxu0 0.0
        %360 = vmatprep.subr.mxu0 0.0
        %361 = vmatpush1.msra.mxu0 0.0
        %362 = vmatprep.subr.mxu0 0.0
        %363 = vmatpush1.msra.mxu0 0.0
        %364 = vmatprep.subr.mxu0 0.0
        %365 = vmatpush1.msra.mxu0 0.0
        %366 = vmatprep.subr.mxu0 0.0
        %367 = vmatpush1.msra.mxu0 0.0
        %368 = vmatprep.subr.mxu0 0.0
        %369 = vmatpush1.msra.mxu0 0.0
        %370 = vmatprep.subr.mxu0 0.0
        %371 = vmatpush1.msra.mxu0 0.0
        %372 = vmatprep.subr.mxu0 0.0
        %373 = vmatpush1.msra.mxu0 0.0
        %374 = vmatprep.subr.mxu0 0.0
        %375 = vmatpush1.msra.mxu0 0.0
        %376 = vmatprep.subr.mxu0 0.0
        %377 = vmatpush1.msra.mxu0 0.0
        %378 = vmatprep.mubr.f32.mxu0 0.0
        %379 = vmatmul.mubr.f32.gmra.mrb[0].mxu0 %v308
        %v380 = vpop.f32.mrb[0].mxu0
        %v381 = vadd.f32 %v297, %v380
        %v382 = vpop.f32.mrb[0].mxu0
        %383 = vdwg.mxu0
        %s384 = scalar_lea.vmem %s265, 4 [#allocation2]
        %v385 = vld [vmem:[%s384] sm:$0xf]
        %v387 = vsel %vm310, %v385, 0
        %389 = vmatprep.subr.mxu0 0.0
        %390 = vmatpush1.msra.mxu0 %v387
        %391 = vmatprep.subr.mxu0 0.0
        %392 = vmatpush1.msra.mxu0 0.0
        %393 = vmatprep.subr.mxu0 0.0
        %394 = vmatpush1.msra.mxu0 0.0
        %395 = vmatprep.subr.mxu0 0.0
        %396 = vmatpush1.msra.mxu0 0.0
        %397 = vmatprep.subr.mxu0 0.0
        %398 = vmatpush1.msra.mxu0 0.0
        %399 = vmatprep.subr.mxu0 0.0
        %400 = vmatpush1.msra.mxu0 0.0
        %401 = vmatprep.subr.mxu0 0.0
        %402 = vmatpush1.msra.mxu0 0.0
        %403 = vmatprep.subr.mxu0 0.0
        %404 = vmatpush1.msra.mxu0 0.0
        %405 = vmatprep.subr.mxu0 0.0
        %406 = vmatpush1.msra.mxu0 0.0
        %407 = vmatprep.subr.mxu0 0.0
        %408 = vmatpush1.msra.mxu0 0.0
        %409 = vmatprep.subr.mxu0 0.0
        %410 = vmatpush1.msra.mxu0 0.0
        %411 = vmatprep.subr.mxu0 0.0
        %412 = vmatpush1.msra.mxu0 0.0
        %413 = vmatprep.subr.mxu0 0.0
        %414 = vmatpush1.msra.mxu0 0.0
        %415 = vmatprep.subr.mxu0 0.0
        %416 = vmatpush1.msra.mxu0 0.0
        %417 = vmatprep.subr.mxu0 0.0
        %418 = vmatpush1.msra.mxu0 0.0
        %419 = vmatprep.subr.mxu0 0.0
        %420 = vmatpush1.msra.mxu0 0.0
        %421 = vmatprep.subr.mxu0 0.0
        %422 = vmatpush1.msra.mxu0 0.0
        %423 = vmatprep.subr.mxu0 0.0
        %424 = vmatpush1.msra.mxu0 0.0
        %425 = vmatprep.subr.mxu0 0.0
        %426 = vmatpush1.msra.mxu0 0.0
        %427 = vmatprep.subr.mxu0 0.0
        %428 = vmatpush1.msra.mxu0 0.0
        %429 = vmatprep.subr.mxu0 0.0
        %430 = vmatpush1.msra.mxu0 0.0
        %431 = vmatprep.subr.mxu0 0.0
        %432 = vmatpush1.msra.mxu0 0.0
        %433 = vmatprep.subr.mxu0 0.0
        %434 = vmatpush1.msra.mxu0 0.0
        %435 = vmatprep.subr.mxu0 0.0
        %436 = vmatpush1.msra.mxu0 0.0
        %437 = vmatprep.subr.mxu0 0.0
        %438 = vmatpush1.msra.mxu0 0.0
        %439 = vmatprep.subr.mxu0 0.0
        %440 = vmatpush1.msra.mxu0 0.0
        %441 = vmatprep.subr.mxu0 0.0
        %442 = vmatpush1.msra.mxu0 0.0
        %443 = vmatprep.subr.mxu0 0.0
        %444 = vmatpush1.msra.mxu0 0.0
        %445 = vmatprep.subr.mxu0 0.0
        %446 = vmatpush1.msra.mxu0 0.0
        %447 = vmatprep.subr.mxu0 0.0
        %448 = vmatpush1.msra.mxu0 0.0
        %449 = vmatprep.subr.mxu0 0.0
        %450 = vmatpush1.msra.mxu0 0.0
        %451 = vmatprep.subr.mxu0 0.0
        %452 = vmatpush1.msra.mxu0 0.0
        %453 = vmatprep.mubr.f32.mxu0 0.0
        %454 = vmatmul.mubr.f32.gmra.mrb[0].mxu0 %v308
        %v455 = vpop.f32.mrb[0].mxu0
        %v456 = vadd.f32 %v297, %v455
        %v457 = vpop.f32.mrb[0].mxu0
        %458 = vdwg.mxu0
        %v459 = vmax.f32 %v381, %v456
        %v460 = vsub.f32 %v381, %v459
        %v461 = vmul.f32 %v460, 1.442695
        %v462 = vpow.pop %v461
        %v463 = vsub.f32 %v456, %v459
        %v464 = vmul.f32 %v463, 1.442695
        %v465 = vpow.pop %v464
        %v466 = vadd.f32 %v462, %v465
        %v467 = vrcp.pop %v466
        %v468 = vmul.f32 %v462, %v467
        %v469 = vld [vmem:[%s1] sm:$0xf]
        %v471 = vsel %vm306, %v469, 0
        %v474 = vsel %vm310, %v468, 0
        %476 = vmatprep.subr.mxu0 0.0
        %477 = vmatpush1.msra.mxu0 %v474
        %478 = vmatprep.subr.mxu0 0.0
        %479 = vmatpush1.msra.mxu0 0.0
        %480 = vmatprep.subr.mxu0 0.0
        %481 = vmatpush1.msra.mxu0 0.0
        %482 = vmatprep.subr.mxu0 0.0
        %483 = vmatpush1.msra.mxu0 0.0
        %484 = vmatprep.subr.mxu0 0.0
        %485 = vmatpush1.msra.mxu0 0.0
        %486 = vmatprep.subr.mxu0 0.0
        %487 = vmatpush1.msra.mxu0 0.0
        %488 = vmatprep.subr.mxu0 0.0
        %489 = vmatpush1.msra.mxu0 0.0
        %490 = vmatprep.subr.mxu0 0.0
        %491 = vmatpush1.msra.mxu0 0.0
        %492 = vmatprep.subr.mxu0 0.0
        %493 = vmatpush1.msra.mxu0 0.0
        %494 = vmatprep.subr.mxu0 0.0
        %495 = vmatpush1.msra.mxu0 0.0
        %496 = vmatprep.subr.mxu0 0.0
        %497 = vmatpush1.msra.mxu0 0.0
        %498 = vmatprep.subr.mxu0 0.0
        %499 = vmatpush1.msra.mxu0 0.0
        %500 = vmatprep.subr.mxu0 0.0
        %501 = vmatpush1.msra.mxu0 0.0
        %502 = vmatprep.subr.mxu0 0.0
        %503 = vmatpush1.msra.mxu0 0.0
        %504 = vmatprep.subr.mxu0 0.0
        %505 = vmatpush1.msra.mxu0 0.0
        %506 = vmatprep.subr.mxu0 0.0
        %507 = vmatpush1.msra.mxu0 0.0
        %508 = vmatprep.subr.mxu0 0.0
        %509 = vmatpush1.msra.mxu0 0.0
        %510 = vmatprep.subr.mxu0 0.0
        %511 = vmatpush1.msra.mxu0 0.0
        %512 = vmatprep.subr.mxu0 0.0
        %513 = vmatpush1.msra.mxu0 0.0
        %514 = vmatprep.subr.mxu0 0.0
        %515 = vmatpush1.msra.mxu0 0.0
        %516 = vmatprep.subr.mxu0 0.0
        %517 = vmatpush1.msra.mxu0 0.0
        %518 = vmatprep.subr.mxu0 0.0
        %519 = vmatpush1.msra.mxu0 0.0
        %520 = vmatprep.subr.mxu0 0.0
        %521 = vmatpush1.msra.mxu0 0.0
        %522 = vmatprep.subr.mxu0 0.0
        %523 = vmatpush1.msra.mxu0 0.0
        %524 = vmatprep.subr.mxu0 0.0
        %525 = vmatpush1.msra.mxu0 0.0
        %526 = vmatprep.subr.mxu0 0.0
        %527 = vmatpush1.msra.mxu0 0.0
        %528 = vmatprep.subr.mxu0 0.0
        %529 = vmatpush1.msra.mxu0 0.0
        %530 = vmatprep.subr.mxu0 0.0
        %531 = vmatpush1.msra.mxu0 0.0
        %532 = vmatprep.subr.mxu0 0.0
        %533 = vmatpush1.msra.mxu0 0.0
        %534 = vmatprep.subr.mxu0 0.0
        %535 = vmatpush1.msra.mxu0 0.0
        %536 = vmatprep.subr.mxu0 0.0
        %537 = vmatpush1.msra.mxu0 0.0
        %538 = vmatprep.subr.mxu0 0.0
        %539 = vmatpush1.msra.mxu0 0.0
        %540 = vmatprep.mubr.f32.mxu0 0.0
        %541 = vmatmul.mubr.f32.gmra.mrb[0].mxu0 %v471
        %v542 = vpop.f32.mrb[0].mxu0
        %v543 = vadd.f32 0.0, %v542
        %v544 = vpop.f32.mrb[0].mxu0
        %545 = vdwg.mxu0
        %v547 = vsel %vm306, %v292, 0
        %v550 = vsel %vm310, %v543, 0
        %552 = vmatprep.subr.mxu0 0.0
        %553 = vmatpush1.msra.mxu0 %v550
        %554 = vmatprep.subr.mxu0 0.0
        %555 = vmatpush1.msra.mxu0 0.0
        %556 = vmatprep.subr.mxu0 0.0
        %557 = vmatpush1.msra.mxu0 0.0
        %558 = vmatprep.subr.mxu0 0.0
        %559 = vmatpush1.msra.mxu0 0.0
        %560 = vmatprep.subr.mxu0 0.0
        %561 = vmatpush1.msra.mxu0 0.0
        %562 = vmatprep.subr.mxu0 0.0
        %563 = vmatpush1.msra.mxu0 0.0
        %564 = vmatprep.subr.mxu0 0.0
        %565 = vmatpush1.msra.mxu0 0.0
        %566 = vmatprep.subr.mxu0 0.0
        %567 = vmatpush1.msra.mxu0 0.0
        %568 = vmatprep.subr.mxu0 0.0
        %569 = vmatpush1.msra.mxu0 0.0
        %570 = vmatprep.subr.mxu0 0.0
        %571 = vmatpush1.msra.mxu0 0.0
        %572 = vmatprep.subr.mxu0 0.0
        %573 = vmatpush1.msra.mxu0 0.0
        %574 = vmatprep.subr.mxu0 0.0
        %575 = vmatpush1.msra.mxu0 0.0
        %576 = vmatprep.subr.mxu0 0.0
        %577 = vmatpush1.msra.mxu0 0.0
        %578 = vmatprep.subr.mxu0 0.0
        %579 = vmatpush1.msra.mxu0 0.0
        %580 = vmatprep.subr.mxu0 0.0
        %581 = vmatpush1.msra.mxu0 0.0
        %582 = vmatprep.subr.mxu0 0.0
        %583 = vmatpush1.msra.mxu0 0.0
        %584 = vmatprep.subr.mxu0 0.0
        %585 = vmatpush1.msra.mxu0 0.0
        %586 = vmatprep.subr.mxu0 0.0
        %587 = vmatpush1.msra.mxu0 0.0
        %588 = vmatprep.subr.mxu0 0.0
        %589 = vmatpush1.msra.mxu0 0.0
        %590 = vmatprep.subr.mxu0 0.0
        %591 = vmatpush1.msra.mxu0 0.0
        %592 = vmatprep.subr.mxu0 0.0
        %593 = vmatpush1.msra.mxu0 0.0
        %594 = vmatprep.subr.mxu0 0.0
        %595 = vmatpush1.msra.mxu0 0.0
        %596 = vmatprep.subr.mxu0 0.0
        %597 = vmatpush1.msra.mxu0 0.0
        %598 = vmatprep.subr.mxu0 0.0
        %599 = vmatpush1.msra.mxu0 0.0
        %600 = vmatprep.subr.mxu0 0.0
        %601 = vmatpush1.msra.mxu0 0.0
        %602 = vmatprep.subr.mxu0 0.0
        %603 = vmatpush1.msra.mxu0 0.0
        %604 = vmatprep.subr.mxu0 0.0
        %605 = vmatpush1.msra.mxu0 0.0
        %606 = vmatprep.subr.mxu0 0.0
        %607 = vmatpush1.msra.mxu0 0.0
        %608 = vmatprep.subr.mxu0 0.0
        %609 = vmatpush1.msra.mxu0 0.0
        %610 = vmatprep.subr.mxu0 0.0
        %611 = vmatpush1.msra.mxu0 0.0
        %612 = vmatprep.subr.mxu0 0.0
        %613 = vmatpush1.msra.mxu0 0.0
        %614 = vmatprep.subr.mxu0 0.0
        %615 = vmatpush1.msra.mxu0 0.0
        %616 = vmatprep.mubr.f32.mxu0 0.0
        %617 = vmatmul.mubr.f32.gmra.mrb[0].mxu0 %v547
        %v618 = vpop.f32.mrb[0].mxu0
        %v619 = vadd.f32 %v303, %v618
        %v620 = vpop.f32.mrb[0].mxu0
        %621 = vdwg.mxu0
        %v622 = vadd.f32 %v305, %v619
        %623 = vst [vmem:[%s290] sm:$0xf] %v622
        %v624 = vmul.f32 %v465, %v467
        %s625 = scalar_lea.vmem %s1, 4
        %v626 = vld [vmem:[%s625] sm:$0xf]
        %v628 = vsel %vm306, %v626, 0
        %v631 = vsel %vm310, %v624, 0
        %633 = vmatprep.subr.mxu0 0.0
        %634 = vmatpush1.msra.mxu0 %v631
        %635 = vmatprep.subr.mxu0 0.0
        %636 = vmatpush1.msra.mxu0 0.0
        %637 = vmatprep.subr.mxu0 0.0
        %638 = vmatpush1.msra.mxu0 0.0
        %639 = vmatprep.subr.mxu0 0.0
        %640 = vmatpush1.msra.mxu0 0.0
        %641 = vmatprep.subr.mxu0 0.0
        %642 = vmatpush1.msra.mxu0 0.0
        %643 = vmatprep.subr.mxu0 0.0
        %644 = vmatpush1.msra.mxu0 0.0
        %645 = vmatprep.subr.mxu0 0.0
        %646 = vmatpush1.msra.mxu0 0.0
        %647 = vmatprep.subr.mxu0 0.0
        %648 = vmatpush1.msra.mxu0 0.0
        %649 = vmatprep.subr.mxu0 0.0
        %650 = vmatpush1.msra.mxu0 0.0
        %651 = vmatprep.subr.mxu0 0.0
        %652 = vmatpush1.msra.mxu0 0.0
        %653 = vmatprep.subr.mxu0 0.0
        %654 = vmatpush1.msra.mxu0 0.0
        %655 = vmatprep.subr.mxu0 0.0
        %656 = vmatpush1.msra.mxu0 0.0
        %657 = vmatprep.subr.mxu0 0.0
        %658 = vmatpush1.msra.mxu0 0.0
        %659 = vmatprep.subr.mxu0 0.0
        %660 = vmatpush1.msra.mxu0 0.0
        %661 = vmatprep.subr.mxu0 0.0
        %662 = vmatpush1.msra.mxu0 0.0
        %663 = vmatprep.subr.mxu0 0.0
        %664 = vmatpush1.msra.mxu0 0.0
        %665 = vmatprep.subr.mxu0 0.0
        %666 = vmatpush1.msra.mxu0 0.0
        %667 = vmatprep.subr.mxu0 0.0
        %668 = vmatpush1.msra.mxu0 0.0
        %669 = vmatprep.subr.mxu0 0.0
        %670 = vmatpush1.msra.mxu0 0.0
        %671 = vmatprep.subr.mxu0 0.0
        %672 = vmatpush1.msra.mxu0 0.0
        %673 = vmatprep.subr.mxu0 0.0
        %674 = vmatpush1.msra.mxu0 0.0
        %675 = vmatprep.subr.mxu0 0.0
        %676 = vmatpush1.msra.mxu0 0.0
        %677 = vmatprep.subr.mxu0 0.0
        %678 = vmatpush1.msra.mxu0 0.0
        %679 = vmatprep.subr.mxu0 0.0
        %680 = vmatpush1.msra.mxu0 0.0
        %681 = vmatprep.subr.mxu0 0.0
        %682 = vmatpush1.msra.mxu0 0.0
        %683 = vmatprep.subr.mxu0 0.0
        %684 = vmatpush1.msra.mxu0 0.0
        %685 = vmatprep.subr.mxu0 0.0
        %686 = vmatpush1.msra.mxu0 0.0
        %687 = vmatprep.subr.mxu0 0.0
        %688 = vmatpush1.msra.mxu0 0.0
        %689 = vmatprep.subr.mxu0 0.0
        %690 = vmatpush1.msra.mxu0 0.0
        %691 = vmatprep.subr.mxu0 0.0
        %692 = vmatpush1.msra.mxu0 0.0
        %693 = vmatprep.subr.mxu0 0.0
        %694 = vmatpush1.msra.mxu0 0.0
        %695 = vmatprep.subr.mxu0 0.0
        %696 = vmatpush1.msra.mxu0 0.0
        %697 = vmatprep.mubr.f32.mxu0 0.0
        %698 = vmatmul.mubr.f32.gmra.mrb[0].mxu0 %v628
        %v699 = vpop.f32.mrb[0].mxu0
        %v700 = vadd.f32 0.0, %v699
        %v701 = vpop.f32.mrb[0].mxu0
        %702 = vdwg.mxu0
        %v704 = vsel %vm310, %v700, 0
        %706 = vmatprep.subr.mxu0 0.0
        %707 = vmatpush1.msra.mxu0 %v704
        %708 = vmatprep.subr.mxu0 0.0
        %709 = vmatpush1.msra.mxu0 0.0
        %710 = vmatprep.subr.mxu0 0.0
        %711 = vmatpush1.msra.mxu0 0.0
        %712 = vmatprep.subr.mxu0 0.0
        %713 = vmatpush1.msra.mxu0 0.0
        %714 = vmatprep.subr.mxu0 0.0
        %715 = vmatpush1.msra.mxu0 0.0
        %716 = vmatprep.subr.mxu0 0.0
        %717 = vmatpush1.msra.mxu0 0.0
        %718 = vmatprep.subr.mxu0 0.0
        %719 = vmatpush1.msra.mxu0 0.0
        %720 = vmatprep.subr.mxu0 0.0
        %721 = vmatpush1.msra.mxu0 0.0
        %722 = vmatprep.subr.mxu0 0.0
        %723 = vmatpush1.msra.mxu0 0.0
        %724 = vmatprep.subr.mxu0 0.0
        %725 = vmatpush1.msra.mxu0 0.0
        %726 = vmatprep.subr.mxu0 0.0
        %727 = vmatpush1.msra.mxu0 0.0
        %728 = vmatprep.subr.mxu0 0.0
        %729 = vmatpush1.msra.mxu0 0.0
        %730 = vmatprep.subr.mxu0 0.0
        %731 = vmatpush1.msra.mxu0 0.0
        %732 = vmatprep.subr.mxu0 0.0
        %733 = vmatpush1.msra.mxu0 0.0
        %734 = vmatprep.subr.mxu0 0.0
        %735 = vmatpush1.msra.mxu0 0.0
        %736 = vmatprep.subr.mxu0 0.0
        %737 = vmatpush1.msra.mxu0 0.0
        %738 = vmatprep.subr.mxu0 0.0
        %739 = vmatpush1.msra.mxu0 0.0
        %740 = vmatprep.subr.mxu0 0.0
        %741 = vmatpush1.msra.mxu0 0.0
        %742 = vmatprep.subr.mxu0 0.0
        %743 = vmatpush1.msra.mxu0 0.0
        %744 = vmatprep.subr.mxu0 0.0
        %745 = vmatpush1.msra.mxu0 0.0
        %746 = vmatprep.subr.mxu0 0.0
        %747 = vmatpush1.msra.mxu0 0.0
        %748 = vmatprep.subr.mxu0 0.0
        %749 = vmatpush1.msra.mxu0 0.0
        %750 = vmatprep.subr.mxu0 0.0
        %751 = vmatpush1.msra.mxu0 0.0
        %752 = vmatprep.subr.mxu0 0.0
        %753 = vmatpush1.msra.mxu0 0.0
        %754 = vmatprep.subr.mxu0 0.0
        %755 = vmatpush1.msra.mxu0 0.0
        %756 = vmatprep.subr.mxu0 0.0
        %757 = vmatpush1.msra.mxu0 0.0
        %758 = vmatprep.subr.mxu0 0.0
        %759 = vmatpush1.msra.mxu0 0.0
        %760 = vmatprep.subr.mxu0 0.0
        %761 = vmatpush1.msra.mxu0 0.0
        %762 = vmatprep.subr.mxu0 0.0
        %763 = vmatpush1.msra.mxu0 0.0
        %764 = vmatprep.subr.mxu0 0.0
        %765 = vmatpush1.msra.mxu0 0.0
        %766 = vmatprep.subr.mxu0 0.0
        %767 = vmatpush1.msra.mxu0 0.0
        %768 = vmatprep.subr.mxu0 0.0
        %769 = vmatpush1.msra.mxu0 0.0
        %770 = vmatprep.mubr.f32.mxu0 0.0
        %771 = vmatmul.mubr.f32.gmra.mrb[0].mxu0 %v547
        %v772 = vpop.f32.mrb[0].mxu0
        %v773 = vadd.f32 %v303, %v772
        %v774 = vpop.f32.mrb[0].mxu0
        %775 = vdwg.mxu0
        %v776 = vld [vmem:[%s384] sm:$0xf]
        %v777 = vadd.f32 %v776, %v773
        %s778 = scalar_lea.vmem %s290, 4 [#allocation3]
        %779 = vst [vmem:[%s778] sm:$0xf] %v777
        %s780 = sand.u32 %s156, 1
        %s781 = sand.u32 %s156, 1
        %s782 = smul.addr %s781, 8
        %s783 = scalar_lea.vmem [#allocation3], %s782
        // Predicated region
        $region86: #{a2network_forward.3} parent=80 // pred_check
          %p784 = pneg %p166
        $region87: #{a2network_forward.3} parent=80 // pred_check_branch
          %786 = sbr.rel (%p784) target = $region89
        $region88: #{a2network_forward.3} parent=80 // pred_region
          %s787 = smul.addr %s17, 4
          %s788 = scalar_lea.vmem %s6, %s787
          // Predicated region
          $region90: #{a2network_forward.3} parent=88 // pred_check
            _
          $region91: #{a2network_forward.3} parent=88 // pred_check_branch
            %790 = sbr.rel (0) target = $region93
          $region92: #{a2network_forward.3} parent=88 // pred_region
            // Predicated region
            $region94: #{a2network_forward.3} parent=92 // pred_check
              _
            $region95: #{a2network_forward.3} parent=92 // pred_check_branch
              %792 = sbr.rel target = $region97
            $region96: #{a2network_forward.3} parent=92 // pred_region
              // Predicated region
              $region109: #{a2network_forward.3} parent=96 // pred_check
                _
              $region110: #{a2network_forward.3} parent=96 // pred_check_branch
                %809 = sbr.rel (0) target = $region112
              $region111: #{a2network_forward.3} parent=96 // pred_region
                loop: start=0, step=1, limit=1
                $region113: #{a2network_forward.3} parent=111 // loop_pre_header
                  _
                $region114: #{a2network_forward.3} parent=111 // loop_header
                  %s811 = sphi 0, %s815
                  %p812 = scmp.ge.s32.totalorder %s811, 1
                  %s816 = sphi %s783, %s783
                  %s817 = sphi %s788, %s788
                $region115: #{a2network_forward.3} parent=111 // loop_header_branch
                  %814 = sbr.rel (%p812) target = $region119
                $region116: #{a2network_forward.3} parent=111 // loop_body
                  _
                $region117: #{a2network_forward.3} parent=111 // loop_footer
                  %s815 = sadd.s32 1, %s811
                $region118: #{a2network_forward.3} parent=111 // loop_footer_branch
                  %810 = sbr.rel target = $region114
                $region119: #{a2network_forward.3} parent=111 // loop_exit
                  _
                loop: start=0, step=1, limit=1
                $region120: #{a2network_forward.3} parent=111 // loop_pre_header
                  _
                $region121: #{a2network_forward.3} parent=111 // loop_header
                  %s820 = sphi 0, %s824
                  %p821 = scmp.ge.s32.totalorder %s820, 1
                  %s825 = sphi %s783, %s783
                  %s826 = sphi %s788, %s788
                $region122: #{a2network_forward.3} parent=111 // loop_header_branch
                  %823 = sbr.rel (%p821) target = $region126
                $region123: #{a2network_forward.3} parent=111 // loop_body
                  %v827 = vld [vmem:[%s825] sm:$0xf]
                  %828 = vst [vmem:[%s826] sm:$0xf] %v827
                  %v829 = vld [vmem:[%s825 + $0x4] sm:$0xf]
                  %830 = vst [vmem:[%s826 + $0x8] sm:$0xf] %v829
                $region124: #{a2network_forward.3} parent=111 // loop_footer
                  %s824 = sadd.s32 1, %s820
                $region125: #{a2network_forward.3} parent=111 // loop_footer_branch
                  %819 = sbr.rel target = $region121
                $region126: #{a2network_forward.3} parent=111 // loop_exit
                  _
              $region112: #{a2network_forward.3} parent=96 // pred_fallthru
                _
            $region97: #{a2network_forward.3} parent=92 // pred_fallthru
              _
            // Predicated region
            $region98: #{a2network_forward.3} parent=92 // pred_check
              _
            $region99: #{a2network_forward.3} parent=92 // pred_check_branch
              %794 = sbr.rel (0) target = $region101
            $region100: #{a2network_forward.3} parent=92 // pred_region
              loop: start=0, step=1, limit=1
              $region102: #{a2network_forward.3} parent=100 // loop_pre_header
                _
              $region103: #{a2network_forward.3} parent=100 // loop_header
                %s797 = sphi 0, %s801
                %p798 = scmp.ge.s32.totalorder %s797, 1
                %s802 = sphi %s783, %s783
                %s803 = sphi %s788, %s788
              $region104: #{a2network_forward.3} parent=100 // loop_header_branch
                %800 = sbr.rel (%p798) target = $region108
              $region105: #{a2network_forward.3} parent=100 // loop_body
                %v804 = vld [vmem:[%s802] sm:$0xf]
                %805 = vst [vmem:[%s803] sm:$0xf] %v804
                %v806 = vld [vmem:[%s802 + $0x4] sm:$0xf]
                %807 = vst [vmem:[%s803 + $0x8] sm:$0xf] %v806
              $region106: #{a2network_forward.3} parent=100 // loop_footer
                %s801 = sadd.s32 1, %s797
              $region107: #{a2network_forward.3} parent=100 // loop_footer_branch
                %796 = sbr.rel target = $region103
              $region108: #{a2network_forward.3} parent=100 // loop_exit
                _
            $region101: #{a2network_forward.3} parent=92 // pred_fallthru
              _
          $region93: #{a2network_forward.3} parent=88 // pred_fallthru
            _
          %831 = vnop
        $region89: #{a2network_forward.3} parent=80 // pred_fallthru
          _
      $region81: #{a2network_forward.3} parent=5 // pred_fallthru
        _
      %p832 = scmp.le.s32.totalorder 2, %s12
      // Predicated region
      $region127: #{a2network_forward.3} parent=5 // pred_check
        %p833 = pneg %p832
      $region128: #{a2network_forward.3} parent=5 // pred_check_branch
        %835 = sbr.rel (%p833) target = $region130
      $region129: #{a2network_forward.3} parent=5 // pred_region
        %s836 = ssub.s32 %s12, 2
        // Predicated region
        $region131: #{a2network_forward.3} parent=129 // pred_check
          %p837 = pneg %p172
        $region132: #{a2network_forward.3} parent=129 // pred_check_branch
          %839 = sbr.rel (%p837) target = $region134
        $region133: #{a2network_forward.3} parent=129 // pred_region
          %s840 = sand.u32 %s157, 1
          %s841 = sand.u32 %s157, 1
          %s842 = smul.addr %s841, 8
          %s843 = scalar_lea.vmem [#allocation3], %s842
        $region134: #{a2network_forward.3} parent=129 // pred_fallthru
          _
      $region130: #{a2network_forward.3} parent=5 // pred_fallthru
        _
    $region6: #{a2network_forward.3} parent=1 // loop_footer
      %s16 = sadd.s32 1, %s12
    $region7: #{a2network_forward.3} parent=1 // loop_footer_branch
      %11 = sbr.rel target = $region3
    $region8: #{a2network_forward.3} parent=1 // loop_exit
      _

</llo_original>
